<compile_context>
chip_gen: v6e
topology: v6e:2x2x1
jax: 0.10.0
libtpu: 0.0.40
codegen_flags: <defaults>
</compile_context>

<pallas_src>
import functools

import jax
import jax.numpy as jnp
import numpy as np
from jax.experimental import pallas as pl
from jax.experimental.pallas import tpu as pltpu

_COMBINED_MAX_LANES = 256            # single-matmul path when H*W <= this


# ----------------------------------------------------------------------------
# Generation-aware VMEM budgets (v5e/v6e: 128 MiB VMEM, v7x: 64 MiB).
# ----------------------------------------------------------------------------
_BUDGET_CACHE = []


def _vmem_budgets():
    """Returns (per-grid-block byte budget, scoped vmem_limit_bytes)."""
    if _BUDGET_CACHE:
        return _BUDGET_CACHE[0]
    vmem_bytes = 64 * 1024 * 1024
    try:
        info = pltpu.get_tpu_info()
        for attr in ("vmem_capacity_bytes", "vmem_bytes", "vmem_size_bytes"):
            if hasattr(info, attr):
                vmem_bytes = int(getattr(info, attr))
                break
    except Exception:
        pass
    if vmem_bytes >= 100 * 1024 * 1024:      # v5e / v6e class (128 MiB VMEM)
        budgets = (8 << 20, 80 << 20)
    else:                                    # v7x class (64 MiB VMEM)
        budgets = (4 << 20, 40 << 20)
    _BUDGET_CACHE.append(budgets)
    return budgets


# ----------------------------------------------------------------------------
# Matmul precision: prefer HIGH (bf16_3x, ~2x fewer MXU passes than HIGHEST;
# exact for one-hot 0/1 weights).  Verified once on-device; falls back to
# HIGHEST if HIGH is not honored / not exact.
# ----------------------------------------------------------------------------
_PRECISION_CACHE = []


def _probe_kernel(x_ref, g_ref, o_ref, *, precision):
    o_ref[...] = jnp.dot(x_ref[...], g_ref[...], precision=precision,
                         preferred_element_type=jnp.float32)


def _gather_precision():
    if _PRECISION_CACHE:
        return _PRECISION_CACHE[0]
    # Values that need > 8 mantissa bits so a single-pass bf16 matmul would be
    # detectably inexact; an identity RHS makes the expected output == input.
    x = (1.0 + np.arange(8 * 128, dtype=np.float32) * np.float32(2.0 ** -20))
    x = x.reshape(8, 128)
    eye = np.eye(128, dtype=np.float32)
    chosen = jax.lax.Precision.HIGHEST
    for prec in (jax.lax.Precision.HIGH, jax.lax.Precision.HIGHEST):
        try:
            out = pl.pallas_call(
                functools.partial(_probe_kernel, precision=prec),
                out_shape=jax.ShapeDtypeStruct((8, 128), jnp.float32),
            )(jnp.asarray(x), jnp.asarray(eye))
            if np.array_equal(np.asarray(jax.block_until_ready(out)), x):
                chosen = prec
                break
        except Exception:
            continue
    _PRECISION_CACHE.append(chosen)
    return chosen


# ----------------------------------------------------------------------------
# Host-side (static) index / selection-matrix construction.
# ----------------------------------------------------------------------------
def _nearest_src_index(dst_size: int, src_size: int) -> np.ndarray:
    """PyTorch 'nearest' source index: floor(dst * src/dst), clamped."""
    dst = np.arange(dst_size, dtype=np.float64)
    src = np.floor(dst * (src_size / dst_size)).astype(np.int64)
    return np.clip(src, 0, src_size - 1)


def _composed_src_index(dst_size: int, mid_size: int, src_size: int) -> np.ndarray:
    """Source index of nearest resize src->mid->dst, shape (dst_size,)."""
    j = _nearest_src_index(dst_size, mid_size)    # final -> intermediate
    k = _nearest_src_index(mid_size, src_size)    # intermediate -> original
    return k[j]


def _sel_matrix(idx: np.ndarray, src_size: int) -> np.ndarray:
    """S[i, idx[i]] = 1 so that (S @ v)[i] = v[idx[i]]."""
    m = np.zeros((idx.size, src_size), dtype=np.float32)
    m[np.arange(idx.size), idx] = 1.0
    return m


def _combined_selection_T(k_h, k_w, w_in: int, hw_in: int) -> np.ndarray:
    """G^T (HW_in, HW_out): (x_flat @ G^T)[p] = x_flat[k_h[p//W_out]*w_in + k_w[p%W_out]]."""
    hw_out = k_h.size * k_w.size
    src = (k_h[:, None] * w_in + k_w[None, :]).reshape(-1)   # (HW_out,)
    g_t = np.zeros((hw_in, hw_out), dtype=np.float32)
    g_t[src, np.arange(hw_out)] = 1.0
    return g_t


# ----------------------------------------------------------------------------
# Block-size selection.
# ----------------------------------------------------------------------------
def _round_up(x: int, m: int) -> int:
    return -(-x // m) * m


def _choose_block_channels(nc: int, per_row_bytes: int, align: int, budget: int):
    """Pick (tc, nc_pad): tc % align == 0, nc_pad % tc == 0, tc within budget.
    Prefers >= 2 grid blocks (v7x megacore / DMA-compute overlap) as long as
    the block does not shrink below half of the largest block that fits."""
    nc_pad = _round_up(nc, align)
    divs = [d for d in range(align, nc_pad + 1, align) if nc_pad % d == 0]
    fit = [d for d in divs if d * per_row_bytes <= budget] or [align]
    best = max(fit)
    two = [d for d in fit if nc_pad // d >= 2 and 2 * d >= best]
    tc = max(two) if two else best
    return tc, nc_pad


# ----------------------------------------------------------------------------
# Kernels.
# ----------------------------------------------------------------------------
def _combined_kernel(x_ref, g_t_ref, o_ref, *, precision):
    # x_ref: (TC, HW_in) lane-dense block of flattened images.
    # g_t_ref: (HW_in, TN) 0/1 selection-matrix column block (host-transposed).
    o_ref[...] = jnp.dot(
        x_ref[...], g_t_ref[...],
        precision=precision,
        preferred_element_type=jnp.float32,
    ).astype(o_ref.dtype)


def _separable_kernel(x_ref, sh_ref, sw_t_ref, o_ref, z_ref, *, precision):
    # x_ref: (TC, H_in, W_in) block of whole images.
    # sh_ref: (H_out, H_in) row-selection matrix (stationary in VMEM).
    # sw_t_ref: (W_in, W_out) column-selection matrix, pre-transposed on host.
    # z_ref: (TC, H_out, W_in) f32 scratch for the row-gather intermediate.
    tc = x_ref.shape[0]
    h_out, w_in = z_ref.shape[1], z_ref.shape[2]
    w_out = o_ref.shape[2]
    sh = sh_ref[...]

    def row_gather(b, carry):
        # Per-image 2-D dot: no (TC, H, H) broadcast of S_H is materialized.
        z_ref[b] = jnp.dot(sh, x_ref[b], precision=precision,
                           preferred_element_type=jnp.float32)
        return carry

    jax.lax.fori_loop(0, tc, row_gather, 0)

    # Column gather: one big (TC*H_out, W_in) @ S_W^T matmul (good MXU M-fill).
    y = jnp.dot(z_ref[...].reshape(tc * h_out, w_in), sw_t_ref[...],
                precision=precision, preferred_element_type=jnp.float32)
    o_ref[...] = y.reshape(tc, h_out, w_out).astype(o_ref.dtype)


# ----------------------------------------------------------------------------
# pallas_call wrappers.
# ----------------------------------------------------------------------------
@jax.jit
def _resize_combined_pallas(x2, g_t):
    nc, hw_in = map(int, x2.shape)
    hw_out = int(g_t.shape[1])
    itemsize = jnp.dtype(x2.dtype).itemsize
    align = max(8, 32 // itemsize)          # sublane tile: 8 f32 / 16 bf16 / 32 int8
    budget, vmem_limit = _vmem_budgets()
    stationary = int(g_t.size) * 4 * 2
    per_row = (hw_in * 2 + hw_out * 2) * itemsize     # double-buffered in + out
    tc, nc_pad = _choose_block_channels(nc, per_row, align,
                                        max(budget - stationary, budget // 2))
    if nc_pad != nc:
        x2 = jnp.pad(x2, ((0, nc_pad - nc), (0, 0)))
    n_i = nc_pad // tc
    # Guarantee a second parallel grid axis when the channel axis collapses to
    # one block (so v7x's 2 TensorCores still have work to split).
    if n_i >= 2 or hw_out % 256 != 0:
        tn = hw_out
    else:
        tn = hw_out // 2                    # multiple of 128 since hw_out % 256 == 0
    n_j = hw_out // tn
    prec = _gather_precision()

    out = pl.pallas_call(
        functools.partial(_combined_kernel, precision=prec),
        out_shape=jax.ShapeDtypeStruct((nc_pad, hw_out), x2.dtype),
        grid_spec=pltpu.PrefetchScalarGridSpec(
            num_scalar_prefetch=0,
            grid=(n_i, n_j),
            in_specs=[
                pl.BlockSpec((tc, hw_in), lambda i, j: (i, 0)),
                pl.BlockSpec((hw_in, tn), lambda i, j: (0, j)),
            ],
            out_specs=pl.BlockSpec((tc, tn), lambda i, j: (i, j)),
        ),
        compiler_params=pltpu.CompilerParams(
            dimension_semantics=("parallel", "parallel"),
            vmem_limit_bytes=vmem_limit,
        ),
    )(x2, g_t)
    return out[:nc] if nc_pad != nc else out


@jax.jit
def _resize_separable_pallas(x3, sh, sw_t):
    nc, h_in, w_in = map(int, x3.shape)
    h_out, w_out = int(sh.shape[0]), int(sw_t.shape[1])
    itemsize = jnp.dtype(x3.dtype).itemsize
    budget, vmem_limit = _vmem_budgets()
    stationary = (int(sh.size) + int(sw_t.size)) * 4 * 2
    # Double-buffered in + out, plus the f32 row-gather intermediate z.
    per_img = (h_in * w_in * 2 + h_out * w_out * 2) * itemsize + h_out * w_in * 4
    # Leading dim of a (tc, H, W) block is not sublane-tiled -> align = 1,
    # which also lets nc=8 split into >= 2 parallel grid steps.
    tc, _ = _choose_block_channels(nc, per_img, 1,
                                   max(budget - stationary, budget // 2))
    prec = _gather_precision()
    # TODO(synk): spatially tile the separable path for very large images whose
    # (in + f32 z + out) single-image footprint exceeds the per-gen VMEM budget.

    return pl.pallas_call(
        functools.partial(_separable_kernel, precision=prec),
        out_shape=jax.ShapeDtypeStruct((nc, h_out, w_out), x3.dtype),
        grid_spec=pltpu.PrefetchScalarGridSpec(
            num_scalar_prefetch=0,
            grid=(nc // tc,),
            in_specs=[
                pl.BlockSpec((tc, h_in, w_in), lambda i: (i, 0, 0)),
                pl.BlockSpec((h_out, h_in), lambda i: (0, 0)),   # stationary
                pl.BlockSpec((w_in, w_out), lambda i: (0, 0)),   # stationary
            ],
            out_specs=pl.BlockSpec((tc, h_out, w_out), lambda i: (i, 0, 0)),
            scratch_shapes=[pltpu.VMEM((tc, h_out, w_in), jnp.float32)],
        ),
        compiler_params=pltpu.CompilerParams(
            dimension_semantics=("parallel",),
            vmem_limit_bytes=vmem_limit,
        ),
    )(x3, sh, sw_t)


# ----------------------------------------------------------------------------
# Forward pass.
# ----------------------------------------------------------------------------
def _resize_roundtrip(x, *, out_h, out_w, new_h, new_w, force_separable=False):
    """Nearest resize (H_in,W_in)->(new_h,new_w)->(out_h,out_w) as a Pallas gather."""
    n, c, h_in, w_in = map(int, x.shape)
    nc = n * c
    k_h = _composed_src_index(out_h, new_h, h_in)
    k_w = _composed_src_index(out_w, new_w, w_in)
    _gather_precision()            # prime the one-time precision probe eagerly

    hw_in, hw_out = h_in * w_in, out_h * out_w
    if (hw_in <= _COMBINED_MAX_LANES and hw_out <= 4 * _COMBINED_MAX_LANES
            and not force_separable):
        # Lane-dense single-matmul path: flatten each image to HW lanes.
        g_t = jnp.asarray(_combined_selection_T(k_h, k_w, w_in, hw_in))
        out2 = _resize_combined_pallas(x.reshape(nc, hw_in), g_t)
        return out2.reshape(n, c, out_h, out_w)

    # General (large-image) separable path: H + W MACs per output element.
    sh = jnp.asarray(_sel_matrix(k_h, h_in))          # (H_out, H_in)
    sw_t = jnp.asarray(_sel_matrix(k_w, w_in).T)      # (W_in, W_out), pre-transposed
    out3 = _resize_separable_pallas(x.reshape(nc, h_in, w_in), sh, sw_t)
    return out3.reshape(n, c, out_h, out_w)


def resize_attack(noised_image, cover_image=None, resize_ratio_range=(0.5, 2.0),
                  rng=None):
    """Forward pass of the Resize noise layer (nearest interpolation)."""
    if cover_image is None:
        cover_image = noised_image
    if rng is None:
        rng = np.random.default_rng(0)
    # random_float(min, max): drawn host-side (numpy) because the intermediate
    # resize size must be static; no device->host sync per call, and the
    # compiled pallas_call is reused across ratios (only the selection
    # matrices change).
    ratio = float(rng.uniform(resize_ratio_range[0], resize_ratio_range[1]))
    out_h, out_w = int(cover_image.shape[2]), int(cover_image.shape[3])
    new_h = max(1, int(ratio * out_h))
    new_w = max(1, int(ratio * out_w))
    return _resize_roundtrip(noised_image, out_h=out_h, out_w=out_w,
                             new_h=new_h, new_w=new_w)


# ----------------------------------------------------------------------------
# Pure-numpy reference.
# ----------------------------------------------------------------------------
def _reference(noised_image, out_h, out_w, new_h, new_w):
    x = np.asarray(noised_image)
    _, _, h_in, w_in = x.shape
    k_h = _composed_src_index(out_h, new_h, h_in)
    k_w = _composed_src_index(out_w, new_w, w_in)
    return x[:, :, k_h][:, :, :, k_w]


if __name__ == "__main__":
    key = jax.random.PRNGKey(0)
    N, C, H, W = 2, 4, 16, 16
    noised = jax.random.normal(key, (N, C, H, W), dtype=jnp.float32)
    cover = noised  # same spatial size, as in the PyTorch module usage

    # Deterministic host-side ratio draw (matches resize_attack below).
    ratio = float(np.random.default_rng(0).uniform(0.5, 2.0))
    new_h = max(1, int(ratio * H))
    new_w = max(1, int(ratio * W))

    out = resize_attack(noised, cover, resize_ratio_range=(0.5, 2.0),
                        rng=np.random.default_rng(0))
    out = jax.block_until_ready(out)
    ref = _reference(noised, H, W, new_h, new_w)
    np.testing.assert_allclose(np.asarray(out), ref, rtol=1e-6, atol=1e-6)
    assert out.shape == (N, C, H, W)

    # Also exercise + verify the separable (large-image) path at the same ratio.
    out_sep = _resize_roundtrip(noised, out_h=H, out_w=W, new_h=new_h,
                                new_w=new_w, force_separable=True)
    out_sep = jax.block_until_ready(out_sep)
    np.testing.assert_allclose(np.asarray(out_sep), ref, rtol=1e-6, atol=1e-6)

    # Channel count that is not a multiple of the sublane tile: exercises the
    # pad-to-aligned-block path (budget-safe replacement of the tc=nc fallback).
    noised3 = jax.random.normal(jax.random.PRNGKey(1), (1, 3, 16, 16),
                                dtype=jnp.float32)
    out3 = _resize_roundtrip(noised3, out_h=16, out_w=16, new_h=new_h, new_w=new_w)
    out3 = jax.block_until_ready(out3)
    ref3 = _reference(noised3, 16, 16, new_h, new_w)
    np.testing.assert_allclose(np.asarray(out3), ref3, rtol=1e-6, atol=1e-6)

    print("KERNEL_OK")
</pallas_src>

<mosaic_0001>
module attributes {stable_mosaic.version = 11 : i64} {
  func.func @_probe_kernel(%arg0: memref<8x128xf32, #tpu.memory_space<vmem>>, %arg1: memref<128x128xf32, #tpu.memory_space<vmem>>, %arg2: memref<8x128xf32, #tpu.memory_space<vmem>>) attributes {dimension_semantics = [], scalar_prefetch = 0 : i64, scratch_operands = 0 : i64, tpu.core_type = #tpu.core_type<tc>} {
    %c0 = arith.constant 0 : index
    %c0_0 = arith.constant 0 : index
    %0 = vector.load %arg0[%c0, %c0_0] : memref<8x128xf32, #tpu.memory_space<vmem>>, vector<8x128xf32>
    %c0_1 = arith.constant 0 : index
    %c0_2 = arith.constant 0 : index
    %1 = vector.load %arg1[%c0_1, %c0_2] : memref<128x128xf32, #tpu.memory_space<vmem>>, vector<128x128xf32>
    %cst = arith.constant dense<0.000000e+00> : vector<8x128xf32>
    %2 = tpu.matmul %0, %1, %cst {dimension_numbers = #tpu.dot_dimension_numbers<[1], [0], [0], [1], [0, 0, 1, 1], [], []>, precision = #tpu.contract_precision<fp32>} : vector<8x128xf32>, vector<128x128xf32>, vector<8x128xf32> -> vector<8x128xf32>
    %c0_3 = arith.constant 0 : index
    %c0_4 = arith.constant 0 : index
    %3 = vector.load %arg2[%c0_3, %c0_4] : memref<8x128xf32, #tpu.memory_space<vmem>>, vector<8x128xf32>
    tpu.vector_store %arg2[%c0_3, %c0_4], %2 {strides = array<i32>} : memref<8x128xf32, #tpu.memory_space<vmem>>, vector<8x128xf32>,
    return
  }
}

module attributes {stable_mosaic.version = 11 : i64} {
  func.func @_combined_kernel(%arg0: i32, %arg1: i32, %arg2: memref<8x256xf32, #tpu.memory_space<vmem>>, %arg3: memref<256x128xf32, #tpu.memory_space<vmem>>, %arg4: memref<8x128xf32, #tpu.memory_space<vmem>>) attributes {dimension_semantics = [#tpu.dimension_semantics<parallel>, #tpu.dimension_semantics<parallel>], iteration_bounds = array<i64: 1, 2>, scalar_prefetch = 0 : i64, scratch_operands = 0 : i64, tpu.core_type = #tpu.core_type<tc>, window_params = [{transform_indices = @transform_0, window_bounds = array<i64: 8, 256>}, {transform_indices = @transform_1, window_bounds = array<i64: 256, 128>}, {transform_indices = @transform_2, window_bounds = array<i64: 8, 128>}]} {
    %c0 = arith.constant 0 : index
    %c0_0 = arith.constant 0 : index
    %0 = vector.load %arg2[%c0, %c0_0] : memref<8x256xf32, #tpu.memory_space<vmem>>, vector<8x256xf32>
    %c0_1 = arith.constant 0 : index
    %c0_2 = arith.constant 0 : index
    %1 = vector.load %arg3[%c0_1, %c0_2] : memref<256x128xf32, #tpu.memory_space<vmem>>, vector<256x128xf32>
    %cst = arith.constant dense<0.000000e+00> : vector<8x128xf32>
    %2 = tpu.matmul %0, %1, %cst {dimension_numbers = #tpu.dot_dimension_numbers<[1], [0], [0], [1], [0, 0, 1, 1], [], []>, precision = #tpu.contract_precision<fp32>} : vector<8x256xf32>, vector<256x128xf32>, vector<8x128xf32> -> vector<8x128xf32>
    %c0_3 = arith.constant 0 : index
    %c0_4 = arith.constant 0 : index
    %3 = vector.load %arg4[%c0_3, %c0_4] : memref<8x128xf32, #tpu.memory_space<vmem>>, vector<8x128xf32>
    tpu.vector_store %arg4[%c0_3, %c0_4], %2 {strides = array<i32>} : memref<8x128xf32, #tpu.memory_space<vmem>>, vector<8x128xf32>,
    return
  }
  func.func @transform_0(%arg0: i32, %arg1: i32) -> (i32, i32) {
    %c0_i32 = arith.constant 0 : i32
    %c0_i32_0 = arith.constant 0 : i32
    return %arg0, %c0_i32 : i32, i32
  }
  func.func @transform_1(%arg0: i32, %arg1: i32) -> (i32, i32) {
    %c0_i32 = arith.constant 0 : i32
    %c0_i32_0 = arith.constant 0 : i32
    return %c0_i32, %arg1 : i32, i32
  }
  func.func @transform_2(%arg0: i32, %arg1: i32) -> (i32, i32) {
    %c0_i32 = arith.constant 0 : i32
    return %arg0, %arg1 : i32, i32
  }
}

</mosaic_0001>

<llo_original>
// kernel: tpu_custom_call.1
$region0: #{tpu_custom_call.1}
  #allocation0 [shape = 'u32[]', space=smem, size = 0x4, offset = 0x4, fixed_abs, tag = 'smem constant byte address 0x4 - core index']
  #allocation1 [shape = 'u32[144,128]{1,0:T(1,128)}', space=vmem, size = 0x12000, scoped, tag = 'internal scratch']
  %s0 = inlined_call_operand.hbm [shape: f32[8,128], index: 0, kind: input, shape index: {}]
  %s1 = inlined_call_operand.hbm [shape: f32[128,128], index: 1, kind: input, shape index: {}]
  %s2 = inlined_call_operand.hbm [shape: f32[8,128], index: 2, kind: output, shape index: {}]
  %s3 = sld [smem:[#allocation0]]
  $region26: #{tpu_custom_call.1} parent=0
    _
  %s5 = ssub.s32 1, %s3
  %s6 = scalar_select 0, %s5, %s3
  $region1: #{tpu_custom_call.1} parent=0
    #allocation2 [shape = 'u8[4096]{0}', space=vmem, size = 0x1000, scoped, tag = 'input window, operand 0, single buffered']
    #allocation3 [shape = 's32[1]{0}', space=sflag, size = 0x4, scoped, tag = 'scoped memory for tpu_custom_call.1']
    #allocation4 [shape = 's32[1]{0}', space=sflag, size = 0x4, scoped, tag = 'scoped memory for tpu_custom_call.1']
    #allocation5 [shape = 'u8[65536]{0}', space=vmem, size = 0x10000, scoped, tag = 'input window, operand 1, single buffered']
    #allocation6 [shape = 's32[1]{0}', space=sflag, size = 0x4, scoped, tag = 'scoped memory for tpu_custom_call.1']
    #allocation7 [shape = 'u8[4096]{0}', space=vmem, size = 0x1000, scoped, tag = 'output window, operand 0, single buffered']
    %7 = vsyncpa [#allocation3], 0
    %8 = vsyncpa [#allocation6], 0
    %9 = vsyncpa [#allocation4], 0
    // Predicated region
    $region2: #{tpu_custom_call.1} parent=1 // pred_check
      _
    $region3: #{tpu_custom_call.1} parent=1 // pred_check_branch
      %11 = sbr.rel (0) target = $region5
    $region4: #{tpu_custom_call.1} parent=1 // pred_region
      %s13 = ssub.s32 128, 128
      %14 = vsyncadd [#allocation3], %s13
      %s16 = sshll.u32 [#allocation2], 4
      %s17 = int_to_ptr.vmem [resolvable:$true] %s16
      %19 = dma.hbm_to_vmem [thread:$0]  %s0, 128, %s17, [#allocation3]
    $region5: #{tpu_custom_call.1} parent=1 // pred_fallthru
      _
    // Predicated region
    $region6: #{tpu_custom_call.1} parent=1 // pred_check
      _
    $region7: #{tpu_custom_call.1} parent=1 // pred_check_branch
      %21 = sbr.rel (0) target = $region9
    $region8: #{tpu_custom_call.1} parent=1 // pred_region
      %s23 = ssub.s32 2048, 2048
      %24 = vsyncadd [#allocation6], %s23
      %s25 = sshll.u32 [#allocation5], 4
      %s26 = int_to_ptr.vmem [resolvable:$true] %s25
      %31 = dma.hbm_to_vmem [thread:$0]  %s1, 2048, %s26, [#allocation6], 128, 128, 8
    $region9: #{tpu_custom_call.1} parent=1 // pred_fallthru
      _
    // Predicated region
    $region10: #{tpu_custom_call.1} parent=1 // pred_check
      _
    $region11: #{tpu_custom_call.1} parent=1 // pred_check_branch
      %33 = sbr.rel (0) target = $region13
    $region12: #{tpu_custom_call.1} parent=1 // pred_region
      %34 = dma.done [#allocation3], 128
    $region13: #{tpu_custom_call.1} parent=1 // pred_fallthru
      _
    // Predicated region
    $region14: #{tpu_custom_call.1} parent=1 // pred_check
      _
    $region15: #{tpu_custom_call.1} parent=1 // pred_check_branch
      %36 = sbr.rel (0) target = $region17
    $region16: #{tpu_custom_call.1} parent=1 // pred_region
      %37 = dma.done [#allocation6], 2048
    $region17: #{tpu_custom_call.1} parent=1 // pred_fallthru
      _
    %v38 = vld [vmem:[#allocation2] sm:$0xff]
    %v39 = vld [vmem:[#allocation5] sm:$0xff]
    %v40 = vld [vmem:[#allocation5 + $0x8] sm:$0xff]
    %v41 = vld [vmem:[#allocation5 + $0x10] sm:$0xff]
    %v42 = vld [vmem:[#allocation5 + $0x18] sm:$0xff]
    %v43 = vld [vmem:[#allocation5 + $0x20] sm:$0xff]
    %v44 = vld [vmem:[#allocation5 + $0x28] sm:$0xff]
    %v45 = vld [vmem:[#allocation5 + $0x30] sm:$0xff]
    %v46 = vld [vmem:[#allocation5 + $0x38] sm:$0xff]
    %v47 = vld [vmem:[#allocation5 + $0x40] sm:$0xff]
    %v48 = vld [vmem:[#allocation5 + $0x48] sm:$0xff]
    %v49 = vld [vmem:[#allocation5 + $0x50] sm:$0xff]
    %v50 = vld [vmem:[#allocation5 + $0x58] sm:$0xff]
    %v51 = vld [vmem:[#allocation5 + $0x60] sm:$0xff]
    %v52 = vld [vmem:[#allocation5 + $0x68] sm:$0xff]
    %v53 = vld [vmem:[#allocation5 + $0x70] sm:$0xff]
    %v54 = vld [vmem:[#allocation5 + $0x78] sm:$0xff]
    %55 = vmatprep.subr.mxu0 0.0
    %v56 = vand.u32 %v54, 4294901760
    %57 = vmatpush1.msra.mxu0 %v56
    %58 = vmatprep.subr.mxu0 0.0
    %v59 = vand.u32 %v53, 4294901760
    %60 = vmatpush1.msra.mxu0 %v59
    %61 = vmatprep.subr.mxu0 0.0
    %v62 = vand.u32 %v52, 4294901760
    %63 = vmatpush1.msra.mxu0 %v62
    %64 = vmatprep.subr.mxu0 0.0
    %v65 = vand.u32 %v51, 4294901760
    %66 = vmatpush1.msra.mxu0 %v65
    %67 = vmatprep.subr.mxu0 0.0
    %v68 = vand.u32 %v50, 4294901760
    %69 = vmatpush1.msra.mxu0 %v68
    %70 = vmatprep.subr.mxu0 0.0
    %v71 = vand.u32 %v49, 4294901760
    %72 = vmatpush1.msra.mxu0 %v71
    %73 = vmatprep.subr.mxu0 0.0
    %v74 = vand.u32 %v48, 4294901760
    %75 = vmatpush1.msra.mxu0 %v74
    %76 = vmatprep.subr.mxu0 0.0
    %v77 = vand.u32 %v47, 4294901760
    %78 = vmatpush1.msra.mxu0 %v77
    %79 = vmatprep.subr.mxu0 0.0
    %v80 = vand.u32 %v46, 4294901760
    %81 = vmatpush1.msra.mxu0 %v80
    %82 = vmatprep.subr.mxu0 0.0
    %v83 = vand.u32 %v45, 4294901760
    %84 = vmatpush1.msra.mxu0 %v83
    %85 = vmatprep.subr.mxu0 0.0
    %v86 = vand.u32 %v44, 4294901760
    %87 = vmatpush1.msra.mxu0 %v86
    %88 = vmatprep.subr.mxu0 0.0
    %v89 = vand.u32 %v43, 4294901760
    %90 = vmatpush1.msra.mxu0 %v89
    %91 = vmatprep.subr.mxu0 0.0
    %v92 = vand.u32 %v42, 4294901760
    %93 = vmatpush1.msra.mxu0 %v92
    %94 = vmatprep.subr.mxu0 0.0
    %v95 = vand.u32 %v41, 4294901760
    %96 = vmatpush1.msra.mxu0 %v95
    %97 = vmatprep.subr.mxu0 0.0
    %v98 = vand.u32 %v40, 4294901760
    %99 = vmatpush1.msra.mxu0 %v98
    %100 = vmatprep.subr.mxu0 0.0
    %v101 = vand.u32 %v39, 4294901760
    %102 = vmatpush1.msra.mxu0 %v101
    %103 = vmatprep.subr.mxu0 0.0
    %104 = vmatpush2.msra.mxu0 0.0
    %105 = vmatprep.subr.mxu0 0.0
    %106 = vmatpush2.msra.mxu0 0.0
    %107 = vmatprep.subr.mxu0 0.0
    %108 = vmatpush2.msra.mxu0 0.0
    %109 = vmatprep.subr.mxu0 0.0
    %110 = vmatpush2.msra.mxu0 0.0
    %111 = vmatprep.subr.mxu0 0.0
    %112 = vmatpush2.msra.mxu0 0.0
    %113 = vmatprep.subr.mxu0 0.0
    %114 = vmatpush2.msra.mxu0 0.0
    %115 = vmatprep.subr.mxu0 0.0
    %116 = vmatpush2.msra.mxu0 0.0
    %117 = vmatprep.subr.mxu0 0.0
    %118 = vmatpush2.msra.mxu0 0.0
    %119 = vmatprep.subr.mxu0 0.0
    %120 = vmatpush2.msra.mxu0 0.0
    %121 = vmatprep.subr.mxu0 0.0
    %122 = vmatpush2.msra.mxu0 0.0
    %123 = vmatprep.subr.mxu0 0.0
    %124 = vmatpush2.msra.mxu0 0.0
    %125 = vmatprep.subr.mxu0 0.0
    %126 = vmatpush2.msra.mxu0 0.0
    %127 = vmatprep.subr.mxu0 0.0
    %128 = vmatpush2.msra.mxu0 0.0
    %129 = vmatprep.subr.mxu0 0.0
    %130 = vmatpush2.msra.mxu0 0.0
    %131 = vmatprep.subr.mxu0 0.0
    %132 = vmatpush2.msra.mxu0 0.0
    %133 = vmatprep.subr.mxu0 0.0
    %134 = vmatpush2.msra.mxu0 0.0
    %135 = vmatprep.mubr.f32.mxu0 0.0
    %v136 = vand.u32 %v38, 4294901760
    %v137 = vsub.f32 %v38, %v136
    %v138 = vand.u32 %v137, 4294901760
    %v139 = vsub.f32 %v137, %v138
    %v140 = vand.u32 %v139, 4294901760
    %141 = vmatmul.mubr.f32.gmra.mxu0 %v140
    %v142 = vpop.f32.mrf.mxu0
    %v143 = vadd.f32 0.0, %v142
    %v144 = vpop.f32.mrf.mxu0
    %145 = vdwg.mxu0
    %146 = vmatprep.subr.mxu0 0.0
    %v147 = vand.u32 %v54, 4294901760
    %v148 = vsub.f32 %v54, %v147
    %v149 = vand.u32 %v148, 4294901760
    %v150 = vsub.f32 %v148, %v149
    %v151 = vand.u32 %v150, 4294901760
    %152 = vmatpush1.msra.mxu0 %v151
    %153 = vmatprep.subr.mxu0 0.0
    %v154 = vand.u32 %v53, 4294901760
    %v155 = vsub.f32 %v53, %v154
    %v156 = vand.u32 %v155, 4294901760
    %v157 = vsub.f32 %v155, %v156
    %v158 = vand.u32 %v157, 4294901760
    %159 = vmatpush1.msra.mxu0 %v158
    %160 = vmatprep.subr.mxu0 0.0
    %v161 = vand.u32 %v52, 4294901760
    %v162 = vsub.f32 %v52, %v161
    %v163 = vand.u32 %v162, 4294901760
    %v164 = vsub.f32 %v162, %v163
    %v165 = vand.u32 %v164, 4294901760
    %166 = vmatpush1.msra.mxu0 %v165
    %167 = vmatprep.subr.mxu0 0.0
    %v168 = vand.u32 %v51, 4294901760
    %v169 = vsub.f32 %v51, %v168
    %v170 = vand.u32 %v169, 4294901760
    %v171 = vsub.f32 %v169, %v170
    %v172 = vand.u32 %v171, 4294901760
    %173 = vmatpush1.msra.mxu0 %v172
    %174 = vmatprep.subr.mxu0 0.0
    %v175 = vand.u32 %v50, 4294901760
    %v176 = vsub.f32 %v50, %v175
    %v177 = vand.u32 %v176, 4294901760
    %v178 = vsub.f32 %v176, %v177
    %v179 = vand.u32 %v178, 4294901760
    %180 = vmatpush1.msra.mxu0 %v179
    %181 = vmatprep.subr.mxu0 0.0
    %v182 = vand.u32 %v49, 4294901760
    %v183 = vsub.f32 %v49, %v182
    %v184 = vand.u32 %v183, 4294901760
    %v185 = vsub.f32 %v183, %v184
    %v186 = vand.u32 %v185, 4294901760
    %187 = vmatpush1.msra.mxu0 %v186
    %188 = vmatprep.subr.mxu0 0.0
    %v189 = vand.u32 %v48, 4294901760
    %v190 = vsub.f32 %v48, %v189
    %v191 = vand.u32 %v190, 4294901760
    %v192 = vsub.f32 %v190, %v191
    %v193 = vand.u32 %v192, 4294901760
    %194 = vmatpush1.msra.mxu0 %v193
    %195 = vmatprep.subr.mxu0 0.0
    %v196 = vand.u32 %v47, 4294901760
    %v197 = vsub.f32 %v47, %v196
    %v198 = vand.u32 %v197, 4294901760
    %v199 = vsub.f32 %v197, %v198
    %v200 = vand.u32 %v199, 4294901760
    %201 = vmatpush1.msra.mxu0 %v200
    %202 = vmatprep.subr.mxu0 0.0
    %v203 = vand.u32 %v46, 4294901760
    %v204 = vsub.f32 %v46, %v203
    %v205 = vand.u32 %v204, 4294901760
    %v206 = vsub.f32 %v204, %v205
    %v207 = vand.u32 %v206, 4294901760
    %208 = vmatpush1.msra.mxu0 %v207
    %209 = vmatprep.subr.mxu0 0.0
    %v210 = vand.u32 %v45, 4294901760
    %v211 = vsub.f32 %v45, %v210
    %v212 = vand.u32 %v211, 4294901760
    %v213 = vsub.f32 %v211, %v212
    %v214 = vand.u32 %v213, 4294901760
    %215 = vmatpush1.msra.mxu0 %v214
    %216 = vmatprep.subr.mxu0 0.0
    %v217 = vand.u32 %v44, 4294901760
    %v218 = vsub.f32 %v44, %v217
    %v219 = vand.u32 %v218, 4294901760
    %v220 = vsub.f32 %v218, %v219
    %v221 = vand.u32 %v220, 4294901760
    %222 = vmatpush1.msra.mxu0 %v221
    %223 = vmatprep.subr.mxu0 0.0
    %v224 = vand.u32 %v43, 4294901760
    %v225 = vsub.f32 %v43, %v224
    %v226 = vand.u32 %v225, 4294901760
    %v227 = vsub.f32 %v225, %v226
    %v228 = vand.u32 %v227, 4294901760
    %229 = vmatpush1.msra.mxu0 %v228
    %230 = vmatprep.subr.mxu0 0.0
    %v231 = vand.u32 %v42, 4294901760
    %v232 = vsub.f32 %v42, %v231
    %v233 = vand.u32 %v232, 4294901760
    %v234 = vsub.f32 %v232, %v233
    %v235 = vand.u32 %v234, 4294901760
    %236 = vmatpush1.msra.mxu0 %v235
    %237 = vmatprep.subr.mxu0 0.0
    %v238 = vand.u32 %v41, 4294901760
    %v239 = vsub.f32 %v41, %v238
    %v240 = vand.u32 %v239, 4294901760
    %v241 = vsub.f32 %v239, %v240
    %v242 = vand.u32 %v241, 4294901760
    %243 = vmatpush1.msra.mxu0 %v242
    %244 = vmatprep.subr.mxu0 0.0
    %v245 = vand.u32 %v40, 4294901760
    %v246 = vsub.f32 %v40, %v245
    %v247 = vand.u32 %v246, 4294901760
    %v248 = vsub.f32 %v246, %v247
    %v249 = vand.u32 %v248, 4294901760
    %250 = vmatpush1.msra.mxu0 %v249
    %251 = vmatprep.subr.mxu0 0.0
    %v252 = vand.u32 %v39, 4294901760
    %v253 = vsub.f32 %v39, %v252
    %v254 = vand.u32 %v253, 4294901760
    %v255 = vsub.f32 %v253, %v254
    %v256 = vand.u32 %v255, 4294901760
    %257 = vmatpush1.msra.mxu0 %v256
    %258 = vmatprep.subr.mxu0 0.0
    %259 = vmatpush2.msra.mxu0 0.0
    %260 = vmatprep.subr.mxu0 0.0
    %261 = vmatpush2.msra.mxu0 0.0
    %262 = vmatprep.subr.mxu0 0.0
    %263 = vmatpush2.msra.mxu0 0.0
    %264 = vmatprep.subr.mxu0 0.0
    %265 = vmatpush2.msra.mxu0 0.0
    %266 = vmatprep.subr.mxu0 0.0
    %267 = vmatpush2.msra.mxu0 0.0
    %268 = vmatprep.subr.mxu0 0.0
    %269 = vmatpush2.msra.mxu0 0.0
    %270 = vmatprep.subr.mxu0 0.0
    %271 = vmatpush2.msra.mxu0 0.0
    %272 = vmatprep.subr.mxu0 0.0
    %273 = vmatpush2.msra.mxu0 0.0
    %274 = vmatprep.subr.mxu0 0.0
    %275 = vmatpush2.msra.mxu0 0.0
    %276 = vmatprep.subr.mxu0 0.0
    %277 = vmatpush2.msra.mxu0 0.0
    %278 = vmatprep.subr.mxu0 0.0
    %279 = vmatpush2.msra.mxu0 0.0
    %280 = vmatprep.subr.mxu0 0.0
    %281 = vmatpush2.msra.mxu0 0.0
    %282 = vmatprep.subr.mxu0 0.0
    %283 = vmatpush2.msra.mxu0 0.0
    %284 = vmatprep.subr.mxu0 0.0
    %285 = vmatpush2.msra.mxu0 0.0
    %286 = vmatprep.subr.mxu0 0.0
    %287 = vmatpush2.msra.mxu0 0.0
    %288 = vmatprep.subr.mxu0 0.0
    %289 = vmatpush2.msra.mxu0 0.0
    %290 = vmatprep.mubr.f32.mxu0 0.0
    %v291 = vand.u32 %v38, 4294901760
    %292 = vmatmul.mubr.f32.gmra.mxu0 %v291
    %v293 = vpop.f32.mrf.mxu0
    %v294 = vadd.f32 %v143, %v293
    %v295 = vpop.f32.mrf.mxu0
    %296 = vdwg.mxu0
    %297 = vmatprep.subr.mxu0 0.0
    %v298 = vand.u32 %v54, 4294901760
    %v299 = vsub.f32 %v54, %v298
    %300 = vmatpush1.msra.mxu0 %v299
    %301 = vmatprep.subr.mxu0 0.0
    %v302 = vand.u32 %v53, 4294901760
    %v303 = vsub.f32 %v53, %v302
    %304 = vmatpush1.msra.mxu0 %v303
    %305 = vmatprep.subr.mxu0 0.0
    %v306 = vand.u32 %v52, 4294901760
    %v307 = vsub.f32 %v52, %v306
    %308 = vmatpush1.msra.mxu0 %v307
    %309 = vmatprep.subr.mxu0 0.0
    %v310 = vand.u32 %v51, 4294901760
    %v311 = vsub.f32 %v51, %v310
    %312 = vmatpush1.msra.mxu0 %v311
    %313 = vmatprep.subr.mxu0 0.0
    %v314 = vand.u32 %v50, 4294901760
    %v315 = vsub.f32 %v50, %v314
    %316 = vmatpush1.msra.mxu0 %v315
    %317 = vmatprep.subr.mxu0 0.0
    %v318 = vand.u32 %v49, 4294901760
    %v319 = vsub.f32 %v49, %v318
    %320 = vmatpush1.msra.mxu0 %v319
    %321 = vmatprep.subr.mxu0 0.0
    %v322 = vand.u32 %v48, 4294901760
    %v323 = vsub.f32 %v48, %v322
    %324 = vmatpush1.msra.mxu0 %v323
    %325 = vmatprep.subr.mxu0 0.0
    %v326 = vand.u32 %v47, 4294901760
    %v327 = vsub.f32 %v47, %v326
    %328 = vmatpush1.msra.mxu0 %v327
    %329 = vmatprep.subr.mxu0 0.0
    %v330 = vand.u32 %v46, 4294901760
    %v331 = vsub.f32 %v46, %v330
    %332 = vmatpush1.msra.mxu0 %v331
    %333 = vmatprep.subr.mxu0 0.0
    %v334 = vand.u32 %v45, 4294901760
    %v335 = vsub.f32 %v45, %v334
    %336 = vmatpush1.msra.mxu0 %v335
    %337 = vmatprep.subr.mxu0 0.0
    %v338 = vand.u32 %v44, 4294901760
    %v339 = vsub.f32 %v44, %v338
    %340 = vmatpush1.msra.mxu0 %v339
    %341 = vmatprep.subr.mxu0 0.0
    %v342 = vand.u32 %v43, 4294901760
    %v343 = vsub.f32 %v43, %v342
    %344 = vmatpush1.msra.mxu0 %v343
    %345 = vmatprep.subr.mxu0 0.0
    %v346 = vand.u32 %v42, 4294901760
    %v347 = vsub.f32 %v42, %v346
    %348 = vmatpush1.msra.mxu0 %v347
    %349 = vmatprep.subr.mxu0 0.0
    %v350 = vand.u32 %v41, 4294901760
    %v351 = vsub.f32 %v41, %v350
    %352 = vmatpush1.msra.mxu0 %v351
    %353 = vmatprep.subr.mxu0 0.0
    %v354 = vand.u32 %v40, 4294901760
    %v355 = vsub.f32 %v40, %v354
    %356 = vmatpush1.msra.mxu0 %v355
    %357 = vmatprep.subr.mxu0 0.0
    %v358 = vand.u32 %v39, 4294901760
    %v359 = vsub.f32 %v39, %v358
    %360 = vmatpush1.msra.mxu0 %v359
    %361 = vmatprep.subr.mxu0 0.0
    %362 = vmatpush2.msra.mxu0 0.0
    %363 = vmatprep.subr.mxu0 0.0
    %364 = vmatpush2.msra.mxu0 0.0
    %365 = vmatprep.subr.mxu0 0.0
    %366 = vmatpush2.msra.mxu0 0.0
    %367 = vmatprep.subr.mxu0 0.0
    %368 = vmatpush2.msra.mxu0 0.0
    %369 = vmatprep.subr.mxu0 0.0
    %370 = vmatpush2.msra.mxu0 0.0
    %371 = vmatprep.subr.mxu0 0.0
    %372 = vmatpush2.msra.mxu0 0.0
    %373 = vmatprep.subr.mxu0 0.0
    %374 = vmatpush2.msra.mxu0 0.0
    %375 = vmatprep.subr.mxu0 0.0
    %376 = vmatpush2.msra.mxu0 0.0
    %377 = vmatprep.subr.mxu0 0.0
    %378 = vmatpush2.msra.mxu0 0.0
    %379 = vmatprep.subr.mxu0 0.0
    %380 = vmatpush2.msra.mxu0 0.0
    %381 = vmatprep.subr.mxu0 0.0
    %382 = vmatpush2.msra.mxu0 0.0
    %383 = vmatprep.subr.mxu0 0.0
    %384 = vmatpush2.msra.mxu0 0.0
    %385 = vmatprep.subr.mxu0 0.0
    %386 = vmatpush2.msra.mxu0 0.0
    %387 = vmatprep.subr.mxu0 0.0
    %388 = vmatpush2.msra.mxu0 0.0
    %389 = vmatprep.subr.mxu0 0.0
    %390 = vmatpush2.msra.mxu0 0.0
    %391 = vmatprep.subr.mxu0 0.0
    %392 = vmatpush2.msra.mxu0 0.0
    %393 = vmatprep.mubr.f32.mxu0 0.0
    %v394 = vand.u32 %v38, 4294901760
    %v395 = vsub.f32 %v38, %v394
    %396 = vmatmul.mubr.f32.gmra.mxu0 %v395
    %v397 = vpop.f32.mrf.mxu0
    %v398 = vadd.f32 %v294, %v397
    %v399 = vpop.f32.mrf.mxu0
    %400 = vdwg.mxu0
    %401 = vmatprep.subr.mxu0 0.0
    %v402 = vand.u32 %v54, 4294901760
    %403 = vmatpush1.msra.mxu0 %v402
    %404 = vmatprep.subr.mxu0 0.0
    %v405 = vand.u32 %v53, 4294901760
    %406 = vmatpush1.msra.mxu0 %v405
    %407 = vmatprep.subr.mxu0 0.0
    %v408 = vand.u32 %v52, 4294901760
    %409 = vmatpush1.msra.mxu0 %v408
    %410 = vmatprep.subr.mxu0 0.0
    %v411 = vand.u32 %v51, 4294901760
    %412 = vmatpush1.msra.mxu0 %v411
    %413 = vmatprep.subr.mxu0 0.0
    %v414 = vand.u32 %v50, 4294901760
    %415 = vmatpush1.msra.mxu0 %v414
    %416 = vmatprep.subr.mxu0 0.0
    %v417 = vand.u32 %v49, 4294901760
    %418 = vmatpush1.msra.mxu0 %v417
    %419 = vmatprep.subr.mxu0 0.0
    %v420 = vand.u32 %v48, 4294901760
    %421 = vmatpush1.msra.mxu0 %v420
    %422 = vmatprep.subr.mxu0 0.0
    %v423 = vand.u32 %v47, 4294901760
    %424 = vmatpush1.msra.mxu0 %v423
    %425 = vmatprep.subr.mxu0 0.0
    %v426 = vand.u32 %v46, 4294901760
    %427 = vmatpush1.msra.mxu0 %v426
    %428 = vmatprep.subr.mxu0 0.0
    %v429 = vand.u32 %v45, 4294901760
    %430 = vmatpush1.msra.mxu0 %v429
    %431 = vmatprep.subr.mxu0 0.0
    %v432 = vand.u32 %v44, 4294901760
    %433 = vmatpush1.msra.mxu0 %v432
    %434 = vmatprep.subr.mxu0 0.0
    %v435 = vand.u32 %v43, 4294901760
    %436 = vmatpush1.msra.mxu0 %v435
    %437 = vmatprep.subr.mxu0 0.0
    %v438 = vand.u32 %v42, 4294901760
    %439 = vmatpush1.msra.mxu0 %v438
    %440 = vmatprep.subr.mxu0 0.0
    %v441 = vand.u32 %v41, 4294901760
    %442 = vmatpush1.msra.mxu0 %v441
    %443 = vmatprep.subr.mxu0 0.0
    %v444 = vand.u32 %v40, 4294901760
    %445 = vmatpush1.msra.mxu0 %v444
    %446 = vmatprep.subr.mxu0 0.0
    %v447 = vand.u32 %v39, 4294901760
    %448 = vmatpush1.msra.mxu0 %v447
    %449 = vmatprep.subr.mxu0 0.0
    %450 = vmatpush2.msra.mxu0 0.0
    %451 = vmatprep.subr.mxu0 0.0
    %452 = vmatpush2.msra.mxu0 0.0
    %453 = vmatprep.subr.mxu0 0.0
    %454 = vmatpush2.msra.mxu0 0.0
    %455 = vmatprep.subr.mxu0 0.0
    %456 = vmatpush2.msra.mxu0 0.0
    %457 = vmatprep.subr.mxu0 0.0
    %458 = vmatpush2.msra.mxu0 0.0
    %459 = vmatprep.subr.mxu0 0.0
    %460 = vmatpush2.msra.mxu0 0.0
    %461 = vmatprep.subr.mxu0 0.0
    %462 = vmatpush2.msra.mxu0 0.0
    %463 = vmatprep.subr.mxu0 0.0
    %464 = vmatpush2.msra.mxu0 0.0
    %465 = vmatprep.subr.mxu0 0.0
    %466 = vmatpush2.msra.mxu0 0.0
    %467 = vmatprep.subr.mxu0 0.0
    %468 = vmatpush2.msra.mxu0 0.0
    %469 = vmatprep.subr.mxu0 0.0
    %470 = vmatpush2.msra.mxu0 0.0
    %471 = vmatprep.subr.mxu0 0.0
    %472 = vmatpush2.msra.mxu0 0.0
    %473 = vmatprep.subr.mxu0 0.0
    %474 = vmatpush2.msra.mxu0 0.0
    %475 = vmatprep.subr.mxu0 0.0
    %476 = vmatpush2.msra.mxu0 0.0
    %477 = vmatprep.subr.mxu0 0.0
    %478 = vmatpush2.msra.mxu0 0.0
    %479 = vmatprep.subr.mxu0 0.0
    %480 = vmatpush2.msra.mxu0 0.0
    %481 = vmatprep.mubr.f32.mxu0 0.0
    %v482 = vand.u32 %v38, 4294901760
    %v483 = vsub.f32 %v38, %v482
    %v484 = vand.u32 %v483, 4294901760
    %485 = vmatmul.mubr.f32.gmra.mxu0 %v484
    %v486 = vpop.f32.mrf.mxu0
    %v487 = vadd.f32 %v398, %v486
    %v488 = vpop.f32.mrf.mxu0
    %489 = vdwg.mxu0
    %490 = vmatprep.subr.mxu0 0.0
    %v491 = vand.u32 %v54, 4294901760
    %v492 = vsub.f32 %v54, %v491
    %v493 = vand.u32 %v492, 4294901760
    %494 = vmatpush1.msra.mxu0 %v493
    %495 = vmatprep.subr.mxu0 0.0
    %v496 = vand.u32 %v53, 4294901760
    %v497 = vsub.f32 %v53, %v496
    %v498 = vand.u32 %v497, 4294901760
    %499 = vmatpush1.msra.mxu0 %v498
    %500 = vmatprep.subr.mxu0 0.0
    %v501 = vand.u32 %v52, 4294901760
    %v502 = vsub.f32 %v52, %v501
    %v503 = vand.u32 %v502, 4294901760
    %504 = vmatpush1.msra.mxu0 %v503
    %505 = vmatprep.subr.mxu0 0.0
    %v506 = vand.u32 %v51, 4294901760
    %v507 = vsub.f32 %v51, %v506
    %v508 = vand.u32 %v507, 4294901760
    %509 = vmatpush1.msra.mxu0 %v508
    %510 = vmatprep.subr.mxu0 0.0
    %v511 = vand.u32 %v50, 4294901760
    %v512 = vsub.f32 %v50, %v511
    %v513 = vand.u32 %v512, 4294901760
    %514 = vmatpush1.msra.mxu0 %v513
    %515 = vmatprep.subr.mxu0 0.0
    %v516 = vand.u32 %v49, 4294901760
    %v517 = vsub.f32 %v49, %v516
    %v518 = vand.u32 %v517, 4294901760
    %519 = vmatpush1.msra.mxu0 %v518
    %520 = vmatprep.subr.mxu0 0.0
    %v521 = vand.u32 %v48, 4294901760
    %v522 = vsub.f32 %v48, %v521
    %v523 = vand.u32 %v522, 4294901760
    %524 = vmatpush1.msra.mxu0 %v523
    %525 = vmatprep.subr.mxu0 0.0
    %v526 = vand.u32 %v47, 4294901760
    %v527 = vsub.f32 %v47, %v526
    %v528 = vand.u32 %v527, 4294901760
    %529 = vmatpush1.msra.mxu0 %v528
    %530 = vmatprep.subr.mxu0 0.0
    %v531 = vand.u32 %v46, 4294901760
    %v532 = vsub.f32 %v46, %v531
    %v533 = vand.u32 %v532, 4294901760
    %534 = vmatpush1.msra.mxu0 %v533
    %535 = vmatprep.subr.mxu0 0.0
    %v536 = vand.u32 %v45, 4294901760
    %v537 = vsub.f32 %v45, %v536
    %v538 = vand.u32 %v537, 4294901760
    %539 = vmatpush1.msra.mxu0 %v538
    %540 = vmatprep.subr.mxu0 0.0
    %v541 = vand.u32 %v44, 4294901760
    %v542 = vsub.f32 %v44, %v541
    %v543 = vand.u32 %v542, 4294901760
    %544 = vmatpush1.msra.mxu0 %v543
    %545 = vmatprep.subr.mxu0 0.0
    %v546 = vand.u32 %v43, 4294901760
    %v547 = vsub.f32 %v43, %v546
    %v548 = vand.u32 %v547, 4294901760
    %549 = vmatpush1.msra.mxu0 %v548
    %550 = vmatprep.subr.mxu0 0.0
    %v551 = vand.u32 %v42, 4294901760
    %v552 = vsub.f32 %v42, %v551
    %v553 = vand.u32 %v552, 4294901760
    %554 = vmatpush1.msra.mxu0 %v553
    %555 = vmatprep.subr.mxu0 0.0
    %v556 = vand.u32 %v41, 4294901760
    %v557 = vsub.f32 %v41, %v556
    %v558 = vand.u32 %v557, 4294901760
    %559 = vmatpush1.msra.mxu0 %v558
    %560 = vmatprep.subr.mxu0 0.0
    %v561 = vand.u32 %v40, 4294901760
    %v562 = vsub.f32 %v40, %v561
    %v563 = vand.u32 %v562, 4294901760
    %564 = vmatpush1.msra.mxu0 %v563
    %565 = vmatprep.subr.mxu0 0.0
    %v566 = vand.u32 %v39, 4294901760
    %v567 = vsub.f32 %v39, %v566
    %v568 = vand.u32 %v567, 4294901760
    %569 = vmatpush1.msra.mxu0 %v568
    %570 = vmatprep.subr.mxu0 0.0
    %571 = vmatpush2.msra.mxu0 0.0
    %572 = vmatprep.subr.mxu0 0.0
    %573 = vmatpush2.msra.mxu0 0.0
    %574 = vmatprep.subr.mxu0 0.0
    %575 = vmatpush2.msra.mxu0 0.0
    %576 = vmatprep.subr.mxu0 0.0
    %577 = vmatpush2.msra.mxu0 0.0
    %578 = vmatprep.subr.mxu0 0.0
    %579 = vmatpush2.msra.mxu0 0.0
    %580 = vmatprep.subr.mxu0 0.0
    %581 = vmatpush2.msra.mxu0 0.0
    %582 = vmatprep.subr.mxu0 0.0
    %583 = vmatpush2.msra.mxu0 0.0
    %584 = vmatprep.subr.mxu0 0.0
    %585 = vmatpush2.msra.mxu0 0.0
    %586 = vmatprep.subr.mxu0 0.0
    %587 = vmatpush2.msra.mxu0 0.0
    %588 = vmatprep.subr.mxu0 0.0
    %589 = vmatpush2.msra.mxu0 0.0
    %590 = vmatprep.subr.mxu0 0.0
    %591 = vmatpush2.msra.mxu0 0.0
    %592 = vmatprep.subr.mxu0 0.0
    %593 = vmatpush2.msra.mxu0 0.0
    %594 = vmatprep.subr.mxu0 0.0
    %595 = vmatpush2.msra.mxu0 0.0
    %596 = vmatprep.subr.mxu0 0.0
    %597 = vmatpush2.msra.mxu0 0.0
    %598 = vmatprep.subr.mxu0 0.0
    %599 = vmatpush2.msra.mxu0 0.0
    %600 = vmatprep.subr.mxu0 0.0
    %601 = vmatpush2.msra.mxu0 0.0
    %602 = vmatprep.mubr.f32.mxu0 0.0
    %v603 = vand.u32 %v38, 4294901760
    %604 = vmatmul.mubr.f32.gmra.mxu0 %v603
    %v605 = vpop.f32.mrf.mxu0
    %v606 = vadd.f32 %v487, %v605
    %v607 = vpop.f32.mrf.mxu0
    %608 = vdwg.mxu0
    %609 = vmatprep.subr.mxu0 0.0
    %v610 = vand.u32 %v54, 4294901760
    %611 = vmatpush1.msra.mxu0 %v610
    %612 = vmatprep.subr.mxu0 0.0
    %v613 = vand.u32 %v53, 4294901760
    %614 = vmatpush1.msra.mxu0 %v613
    %615 = vmatprep.subr.mxu0 0.0
    %v616 = vand.u32 %v52, 4294901760
    %617 = vmatpush1.msra.mxu0 %v616
    %618 = vmatprep.subr.mxu0 0.0
    %v619 = vand.u32 %v51, 4294901760
    %620 = vmatpush1.msra.mxu0 %v619
    %621 = vmatprep.subr.mxu0 0.0
    %v622 = vand.u32 %v50, 4294901760
    %623 = vmatpush1.msra.mxu0 %v622
    %624 = vmatprep.subr.mxu0 0.0
    %v625 = vand.u32 %v49, 4294901760
    %626 = vmatpush1.msra.mxu0 %v625
    %627 = vmatprep.subr.mxu0 0.0
    %v628 = vand.u32 %v48, 4294901760
    %629 = vmatpush1.msra.mxu0 %v628
    %630 = vmatprep.subr.mxu0 0.0
    %v631 = vand.u32 %v47, 4294901760
    %632 = vmatpush1.msra.mxu0 %v631
    %633 = vmatprep.subr.mxu0 0.0
    %v634 = vand.u32 %v46, 4294901760
    %635 = vmatpush1.msra.mxu0 %v634
    %636 = vmatprep.subr.mxu0 0.0
    %v637 = vand.u32 %v45, 4294901760
    %638 = vmatpush1.msra.mxu0 %v637
    %639 = vmatprep.subr.mxu0 0.0
    %v640 = vand.u32 %v44, 4294901760
    %641 = vmatpush1.msra.mxu0 %v640
    %642 = vmatprep.subr.mxu0 0.0
    %v643 = vand.u32 %v43, 4294901760
    %644 = vmatpush1.msra.mxu0 %v643
    %645 = vmatprep.subr.mxu0 0.0
    %v646 = vand.u32 %v42, 4294901760
    %647 = vmatpush1.msra.mxu0 %v646
    %648 = vmatprep.subr.mxu0 0.0
    %v649 = vand.u32 %v41, 4294901760
    %650 = vmatpush1.msra.mxu0 %v649
    %651 = vmatprep.subr.mxu0 0.0
    %v652 = vand.u32 %v40, 4294901760
    %653 = vmatpush1.msra.mxu0 %v652
    %654 = vmatprep.subr.mxu0 0.0
    %v655 = vand.u32 %v39, 4294901760
    %656 = vmatpush1.msra.mxu0 %v655
    %657 = vmatprep.subr.mxu0 0.0
    %658 = vmatpush2.msra.mxu0 0.0
    %659 = vmatprep.subr.mxu0 0.0
    %660 = vmatpush2.msra.mxu0 0.0
    %661 = vmatprep.subr.mxu0 0.0
    %662 = vmatpush2.msra.mxu0 0.0
    %663 = vmatprep.subr.mxu0 0.0
    %664 = vmatpush2.msra.mxu0 0.0
    %665 = vmatprep.subr.mxu0 0.0
    %666 = vmatpush2.msra.mxu0 0.0
    %667 = vmatprep.subr.mxu0 0.0
    %668 = vmatpush2.msra.mxu0 0.0
    %669 = vmatprep.subr.mxu0 0.0
    %670 = vmatpush2.msra.mxu0 0.0
    %671 = vmatprep.subr.mxu0 0.0
    %672 = vmatpush2.msra.mxu0 0.0
    %673 = vmatprep.subr.mxu0 0.0
    %674 = vmatpush2.msra.mxu0 0.0
    %675 = vmatprep.subr.mxu0 0.0
    %676 = vmatpush2.msra.mxu0 0.0
    %677 = vmatprep.subr.mxu0 0.0
    %678 = vmatpush2.msra.mxu0 0.0
    %679 = vmatprep.subr.mxu0 0.0
    %680 = vmatpush2.msra.mxu0 0.0
    %681 = vmatprep.subr.mxu0 0.0
    %682 = vmatpush2.msra.mxu0 0.0
    %683 = vmatprep.subr.mxu0 0.0
    %684 = vmatpush2.msra.mxu0 0.0
    %685 = vmatprep.subr.mxu0 0.0
    %686 = vmatpush2.msra.mxu0 0.0
    %687 = vmatprep.subr.mxu0 0.0
    %688 = vmatpush2.msra.mxu0 0.0
    %689 = vmatprep.mubr.f32.mxu0 0.0
    %v690 = vand.u32 %v38, 4294901760
    %691 = vmatmul.mubr.f32.gmra.mxu0 %v690
    %v692 = vpop.f32.mrf.mxu0
    %v693 = vadd.f32 %v606, %v692
    %v694 = vpop.f32.mrf.mxu0
    %695 = vdwg.mxu0
    %696 = vst [vmem:[#allocation7] sm:$0xff] %v693
    // Predicated region
    $region18: #{tpu_custom_call.1} parent=1 // pred_check
      _
    $region19: #{tpu_custom_call.1} parent=1 // pred_check_branch
      %698 = sbr.rel (0) target = $region21
    $region20: #{tpu_custom_call.1} parent=1 // pred_region
      %s700 = ssub.s32 128, 128
      %701 = vsyncadd [#allocation4], %s700
      %s703 = sshll.u32 [#allocation7], 4
      %s704 = int_to_ptr.vmem [resolvable:$true] %s703
      %706 = dma.vmem_to_hbm [thread:$0]  %s704, 128, %s2, [#allocation4]
    $region21: #{tpu_custom_call.1} parent=1 // pred_fallthru
      _
    // Predicated region
    $region22: #{tpu_custom_call.1} parent=1 // pred_check
      _
    $region23: #{tpu_custom_call.1} parent=1 // pred_check_branch
      %708 = sbr.rel (0) target = $region25
    $region24: #{tpu_custom_call.1} parent=1 // pred_region
      %709 = dma.done [#allocation4], 128
    $region25: #{tpu_custom_call.1} parent=1 // pred_fallthru
      _
    %710 = vsyncpa [#allocation3], 1
    %711 = vsyncpa [#allocation6], 1
    %712 = vsyncpa [#allocation4], 1

// kernel: _resize_combined_pallas.1
$region0: #{_resize_combined_pallas.1}
  #allocation0 [shape = 'u32[]', space=smem, size = 0x4, offset = 0x4, fixed_abs, tag = 'smem constant byte address 0x4 - core index']
  #allocation1 [shape = 'u32[144,128]{1,0:T(1,128)}', space=vmem, size = 0x12000, scoped, tag = 'internal scratch']
  %s0 = inlined_call_operand.hbm [shape: f32[8,256], index: 0, kind: input, shape index: {}]
  %s1 = inlined_call_operand.hbm [shape: f32[256,256], index: 1, kind: input, shape index: {}]
  %s2 = inlined_call_operand.hbm [shape: f32[8,256], index: 2, kind: output, shape index: {}]
  %s3 = sld [smem:[#allocation0]]
  $region49: #{_resize_combined_pallas.1} parent=0
    _
  %s5 = ssub.s32 1, %s3
  %s6 = scalar_select 0, %s5, %s3
  $region1: #{_resize_combined_pallas.1} parent=0
    #allocation2 [shape = 'u8[8192]{0}', space=vmem, size = 0x2000, scoped, tag = 'input window, operand 0, single buffered']
    #allocation3 [shape = 's32[2]{0}', space=sflag, size = 0x8, scoped, tag = 'scoped memory for _resize_combined_pallas.1']
    #allocation4 [shape = 's32[2]{0}', space=sflag, size = 0x8, scoped, tag = 'scoped memory for _resize_combined_pallas.1']
    #allocation5 [shape = 'u8[262144]{0}', space=vmem, size = 0x40000, scoped, tag = 'input window, operand 1']
    #allocation6 [shape = 's32[2]{0}', space=sflag, size = 0x8, scoped, tag = 'scoped memory for _resize_combined_pallas.1']
    #allocation7 [shape = 'u8[8192]{0}', space=vmem, size = 0x2000, scoped, tag = 'output window, operand 0']
    %7 = vsyncpa [#allocation3], 0
    %8 = vsyncpa [#allocation6], 0
    %s9 = scalar_lea.sflag [#allocation6], 1
    %10 = vsyncpa %s9, 0
    %11 = vsyncpa [#allocation4], 0
    %s12 = scalar_lea.sflag [#allocation4], 1
    %13 = vsyncpa %s12, 0
    loop: start=0, step=1, limit=4
    $region2: #{_resize_combined_pallas.1} parent=1 // loop_pre_header
      _
    $region3: #{_resize_combined_pallas.1} parent=1 // loop_header
      %s15 = sphi 0, %s19
      %p16 = scmp.ge.s32.totalorder %s15, 4
      %s22 = sphi 0, %s34
      %s23 = sphi 0, %s30
      %s24 = sphi 0, %s22
      %s25 = sphi 0, %s23
      %s26 = sphi 0, %s24
      %s27 = sphi 0, %s25
      %s37 = sphi 0, %s39
      %s40 = sphi 0, %s37
      %s41 = sphi 0, %s40
      %s57 = sphi 0, %s41
      %s63 = sphi 0, %s65
      %s66 = sphi 0, %s63
      %s67 = sphi 0, %s66
      %s83 = sphi 0, %s67
      %s91 = sphi 0, %s93
      %s94 = sphi 0, %s91
      %s95 = sphi 0, %s94
      %s111 = sphi 0, %s95
    $region4: #{_resize_combined_pallas.1} parent=1 // loop_header_branch
      %18 = sbr.rel (%p16) target = $region8
    $region5: #{_resize_combined_pallas.1} parent=1 // loop_body
      %s20 = ssub.s32 %s15, 1
      %s21 = ssub.s32 %s15, 2
      %s28 = sadd.s32 1, %s23
      %p29 = scmp.ge.s32.totalorder %s28, 2
      %s30 = scalar_select %p29, 0, %s28
      %s31 = sadd.s32 1, %s22
      %s32 = scalar_select %p29, %s31, %s22
      %p33 = scmp.ge.s32.totalorder %s32, 1
      %s34 = scalar_select %p33, 0, %s32
      %s35 = ssub.s32 %s22, %s34
      %p36 = scmp.eq.s32.totalorder %s35, 0
      %s38 = sadd.s32 %s37, 1
      %s39 = scalar_select %p36, %s37, %s38
      %p42 = pneg %p36
      %p43 = scmp.eq.s32.totalorder %s15, 1
      %p44 = por %p42, %p43
      %p45 = scmp.ne.s32.totalorder %s37, %s40
      %p46 = scmp.eq.s32.totalorder %s15, 0
      %p47 = por %p45, %p46
      %p48 = scmp.ne.s32.totalorder %s37, %s40
      %p49 = scmp.eq.s32.totalorder %s20, 1
      %p50 = por %p48, %p49
      %p51 = scmp.ne.s32.totalorder %s40, %s41
      %p52 = scmp.eq.s32.totalorder %s20, 0
      %p53 = por %p51, %p52
      %p54 = scmp.ne.s32.totalorder %s40, %s41
      %p55 = scmp.eq.s32.totalorder %s21, 1
      %p56 = por %p54, %p55
      %p58 = scmp.ne.s32.totalorder %s41, %s57
      %p59 = scmp.eq.s32.totalorder %s21, 0
      %p60 = por %p58, %p59
      %s61 = ssub.s32 %s23, %s30
      %p62 = scmp.eq.s32.totalorder %s61, 0
      %s64 = sadd.s32 %s63, 1
      %s65 = scalar_select %p62, %s63, %s64
      %p68 = pneg %p62
      %p69 = scmp.eq.s32.totalorder %s15, 1
      %p70 = por %p68, %p69
      %p71 = scmp.ne.s32.totalorder %s63, %s66
      %p72 = scmp.eq.s32.totalorder %s15, 0
      %p73 = por %p71, %p72
      %p74 = scmp.ne.s32.totalorder %s63, %s66
      %p75 = scmp.eq.s32.totalorder %s20, 1
      %p76 = por %p74, %p75
      %p77 = scmp.ne.s32.totalorder %s66, %s67
      %p78 = scmp.eq.s32.totalorder %s20, 0
      %p79 = por %p77, %p78
      %p80 = scmp.ne.s32.totalorder %s66, %s67
      %p81 = scmp.eq.s32.totalorder %s21, 1
      %p82 = por %p80, %p81
      %p84 = scmp.ne.s32.totalorder %s67, %s83
      %p85 = scmp.eq.s32.totalorder %s21, 0
      %p86 = por %p84, %p85
      %s87 = ssub.s32 %s22, %s34
      %s88 = ssub.s32 %s23, %s30
      %s89 = sor.u32 %s87, %s88
      %p90 = scmp.eq.s32.totalorder %s89, 0
      %s92 = sadd.s32 %s91, 1
      %s93 = scalar_select %p90, %s91, %s92
      %p96 = pneg %p90
      %p97 = scmp.eq.s32.totalorder %s15, 1
      %p98 = por %p96, %p97
      %p99 = scmp.ne.s32.totalorder %s91, %s94
      %p100 = scmp.eq.s32.totalorder %s15, 0
      %p101 = por %p99, %p100
      %p102 = scmp.ne.s32.totalorder %s91, %s94
      %p103 = scmp.eq.s32.totalorder %s20, 1
      %p104 = por %p102, %p103
      %p105 = scmp.ne.s32.totalorder %s94, %s95
      %p106 = scmp.eq.s32.totalorder %s20, 0
      %p107 = por %p105, %p106
      %p108 = scmp.ne.s32.totalorder %s94, %s95
      %p109 = scmp.eq.s32.totalorder %s21, 1
      %p110 = por %p108, %p109
      %p112 = scmp.ne.s32.totalorder %s95, %s111
      %p113 = scmp.eq.s32.totalorder %s21, 0
      %p114 = por %p112, %p113
      %p115 = scmp.le.s32.totalorder 1, %s15
      %p116 = scmp.lt.s32.totalorder %s15, 3
      %p117 = pnand %p115, %p116
      %p118 = pneg %p117
      // Predicated region
      $region9: #{_resize_combined_pallas.1} parent=5 // pred_check
        _
      $region10: #{_resize_combined_pallas.1} parent=5 // pred_check_branch
        %120 = sbr.rel (%p117) target = $region12
      $region11: #{_resize_combined_pallas.1} parent=5 // pred_region
        %s121 = ssub.s32 %s15, 1
        // Predicated region
        $region13: #{_resize_combined_pallas.1} parent=11 // pred_check
          %p122 = pneg %p53
        $region14: #{_resize_combined_pallas.1} parent=11 // pred_check_branch
          %124 = sbr.rel (%p122) target = $region16
        $region15: #{_resize_combined_pallas.1} parent=11 // pred_region
          %s126 = ssub.s32 256, 256
          %127 = vsyncadd [#allocation3], %s126
          %s128 = smul.addr %s24, 2
          %s129 = smul.addr %s128, 128
          %s130 = scalar_lea.hbm %s0, %s129
          %s132 = sshll.u32 [#allocation2], 4
          %s133 = int_to_ptr.vmem [resolvable:$true] %s132
          %135 = dma.hbm_to_vmem [thread:$0]  %s130, 256, %s133, [#allocation3]
        $region16: #{_resize_combined_pallas.1} parent=11 // pred_fallthru
          _
      $region12: #{_resize_combined_pallas.1} parent=5 // pred_fallthru
        _
      %p136 = scmp.lt.s32.totalorder %s15, 2
      // Predicated region
      $region17: #{_resize_combined_pallas.1} parent=5 // pred_check
        %p137 = pneg %p136
      $region18: #{_resize_combined_pallas.1} parent=5 // pred_check_branch
        %139 = sbr.rel (%p137) target = $region20
      $region19: #{_resize_combined_pallas.1} parent=5 // pred_region
        // Predicated region
        $region21: #{_resize_combined_pallas.1} parent=19 // pred_check
          %p140 = pneg %p73
        $region22: #{_resize_combined_pallas.1} parent=19 // pred_check_branch
          %142 = sbr.rel (%p140) target = $region24
        $region23: #{_resize_combined_pallas.1} parent=19 // pred_region
          %s143 = sand.u32 %s63, 1
          %s144 = scalar_lea.sflag [#allocation6], %s143
          %s145 = sand.u32 %s63, 1
          %s146 = smul.addr %s145, 256
          %s147 = scalar_lea.vmem [#allocation5], %s146
          %s149 = ssub.s32 4096, 4096
          %150 = vsyncadd %s144, %s149
          %s151 = smul.addr %s23, 128
          %s152 = scalar_lea.hbm %s1, %s151
          %s153 = sshll.u32 %s147, 4
          %s154 = int_to_ptr.vmem [resolvable:$true] %s153
          %159 = dma.hbm_to_vmem [thread:$0]  %s152, 4096, %s154, %s144, 256, 128, 8
        $region24: #{_resize_combined_pallas.1} parent=19 // pred_fallthru
          _
      $region20: #{_resize_combined_pallas.1} parent=5 // pred_fallthru
        _
      %p160 = scmp.le.s32.totalorder 1, %s15
      %p161 = scmp.lt.s32.totalorder %s15, 3
      %p162 = pnand %p160, %p161
      %p163 = pneg %p162
      // Predicated region
      $region25: #{_resize_combined_pallas.1} parent=5 // pred_check
        _
      $region26: #{_resize_combined_pallas.1} parent=5 // pred_check_branch
        %165 = sbr.rel (%p162) target = $region28
      $region27: #{_resize_combined_pallas.1} parent=5 // pred_region
        %s166 = ssub.s32 %s15, 1
        // Predicated region
        $region29: #{_resize_combined_pallas.1} parent=27 // pred_check
          %p167 = pneg %p53
        $region30: #{_resize_combined_pallas.1} parent=27 // pred_check_branch
          %169 = sbr.rel (%p167) target = $region32
        $region31: #{_resize_combined_pallas.1} parent=27 // pred_region
          %170 = dma.done [#allocation3], 256
        $region32: #{_resize_combined_pallas.1} parent=27 // pred_fallthru
          _
        %s171 = sand.u32 %s66, 1
        %s172 = scalar_lea.sflag [#allocation6], %s171
        %s173 = sand.u32 %s66, 1
        %s174 = smul.addr %s173, 256
        %s175 = scalar_lea.vmem [#allocation5], %s174
        // Predicated region
        $region33: #{_resize_combined_pallas.1} parent=27 // pred_check
          %p176 = pneg %p79
        $region34: #{_resize_combined_pallas.1} parent=27 // pred_check_branch
          %178 = sbr.rel (%p176) target = $region36
        $region35: #{_resize_combined_pallas.1} parent=27 // pred_region
          %179 = dma.done %s172, 4096
        $region36: #{_resize_combined_pallas.1} parent=27 // pred_fallthru
          _
        %p180 = pneg %p53
        %p181 = pneg %p50
        %s182 = sand.u32 %s66, 1
        %s183 = scalar_lea.sflag [#allocation6], %s182
        %s184 = sand.u32 %s66, 1
        %s185 = smul.addr %s184, 256
        %s186 = scalar_lea.vmem [#allocation5], %s185
        %p187 = pneg %p79
        %p188 = pneg %p76
        %p189 = pneg %p107
        %p190 = pneg %p104
        %s191 = sand.u32 %s94, 1
        %s192 = scalar_lea.sflag [#allocation4], %s191
        %s193 = sand.u32 %s94, 1
        %s194 = smul.addr %s193, 8
        %s195 = scalar_lea.vmem [#allocation7], %s194
        %v196 = vld [vmem:[#allocation2] sm:$0xff]
        %v197 = vld [vmem:[#allocation2 + $0x8] sm:$0xff]
        %v198 = vld [vmem:[%s175] sm:$0xff]
        %v199 = vld [vmem:[%s175 + $0x8] sm:$0xff]
        %v200 = vld [vmem:[%s175 + $0x10] sm:$0xff]
        %v201 = vld [vmem:[%s175 + $0x18] sm:$0xff]
        %v202 = vld [vmem:[%s175 + $0x20] sm:$0xff]
        %v203 = vld [vmem:[%s175 + $0x28] sm:$0xff]
        %v204 = vld [vmem:[%s175 + $0x30] sm:$0xff]
        %v205 = vld [vmem:[%s175 + $0x38] sm:$0xff]
        %v206 = vld [vmem:[%s175 + $0x40] sm:$0xff]
        %v207 = vld [vmem:[%s175 + $0x48] sm:$0xff]
        %v208 = vld [vmem:[%s175 + $0x50] sm:$0xff]
        %v209 = vld [vmem:[%s175 + $0x58] sm:$0xff]
        %v210 = vld [vmem:[%s175 + $0x60] sm:$0xff]
        %v211 = vld [vmem:[%s175 + $0x68] sm:$0xff]
        %v212 = vld [vmem:[%s175 + $0x70] sm:$0xff]
        %v213 = vld [vmem:[%s175 + $0x78] sm:$0xff]
        %v214 = vld [vmem:[%s175 + $0x80] sm:$0xff]
        %v215 = vld [vmem:[%s175 + $0x88] sm:$0xff]
        %v216 = vld [vmem:[%s175 + $0x90] sm:$0xff]
        %v217 = vld [vmem:[%s175 + $0x98] sm:$0xff]
        %v218 = vld [vmem:[%s175 + $0xa0] sm:$0xff]
        %v219 = vld [vmem:[%s175 + $0xa8] sm:$0xff]
        %v220 = vld [vmem:[%s175 + $0xb0] sm:$0xff]
        %v221 = vld [vmem:[%s175 + $0xb8] sm:$0xff]
        %v222 = vld [vmem:[%s175 + $0xc0] sm:$0xff]
        %v223 = vld [vmem:[%s175 + $0xc8] sm:$0xff]
        %v224 = vld [vmem:[%s175 + $0xd0] sm:$0xff]
        %v225 = vld [vmem:[%s175 + $0xd8] sm:$0xff]
        %v226 = vld [vmem:[%s175 + $0xe0] sm:$0xff]
        %v227 = vld [vmem:[%s175 + $0xe8] sm:$0xff]
        %v228 = vld [vmem:[%s175 + $0xf0] sm:$0xff]
        %v229 = vld [vmem:[%s175 + $0xf8] sm:$0xff]
        %230 = vmatprep.subr.mxu0 0.0
        %v231 = vand.u32 %v213, 4294901760
        %232 = vmatpush1.msra.mxu0 %v231
        %233 = vmatprep.subr.mxu0 0.0
        %v234 = vand.u32 %v212, 4294901760
        %235 = vmatpush1.msra.mxu0 %v234
        %236 = vmatprep.subr.mxu0 0.0
        %v237 = vand.u32 %v211, 4294901760
        %238 = vmatpush1.msra.mxu0 %v237
        %239 = vmatprep.subr.mxu0 0.0
        %v240 = vand.u32 %v210, 4294901760
        %241 = vmatpush1.msra.mxu0 %v240
        %242 = vmatprep.subr.mxu0 0.0
        %v243 = vand.u32 %v209, 4294901760
        %244 = vmatpush1.msra.mxu0 %v243
        %245 = vmatprep.subr.mxu0 0.0
        %v246 = vand.u32 %v208, 4294901760
        %247 = vmatpush1.msra.mxu0 %v246
        %248 = vmatprep.subr.mxu0 0.0
        %v249 = vand.u32 %v207, 4294901760
        %250 = vmatpush1.msra.mxu0 %v249
        %251 = vmatprep.subr.mxu0 0.0
        %v252 = vand.u32 %v206, 4294901760
        %253 = vmatpush1.msra.mxu0 %v252
        %254 = vmatprep.subr.mxu0 0.0
        %v255 = vand.u32 %v205, 4294901760
        %256 = vmatpush1.msra.mxu0 %v255
        %257 = vmatprep.subr.mxu0 0.0
        %v258 = vand.u32 %v204, 4294901760
        %259 = vmatpush1.msra.mxu0 %v258
        %260 = vmatprep.subr.mxu0 0.0
        %v261 = vand.u32 %v203, 4294901760
        %262 = vmatpush1.msra.mxu0 %v261
        %263 = vmatprep.subr.mxu0 0.0
        %v264 = vand.u32 %v202, 4294901760
        %265 = vmatpush1.msra.mxu0 %v264
        %266 = vmatprep.subr.mxu0 0.0
        %v267 = vand.u32 %v201, 4294901760
        %268 = vmatpush1.msra.mxu0 %v267
        %269 = vmatprep.subr.mxu0 0.0
        %v270 = vand.u32 %v200, 4294901760
        %271 = vmatpush1.msra.mxu0 %v270
        %272 = vmatprep.subr.mxu0 0.0
        %v273 = vand.u32 %v199, 4294901760
        %274 = vmatpush1.msra.mxu0 %v273
        %275 = vmatprep.subr.mxu0 0.0
        %v276 = vand.u32 %v198, 4294901760
        %277 = vmatpush1.msra.mxu0 %v276
        %278 = vmatprep.subr.mxu0 0.0
        %v279 = vand.u32 %v229, 4294901760
        %280 = vmatpush2.msra.mxu0 %v279
        %281 = vmatprep.subr.mxu0 0.0
        %v282 = vand.u32 %v228, 4294901760
        %283 = vmatpush2.msra.mxu0 %v282
        %284 = vmatprep.subr.mxu0 0.0
        %v285 = vand.u32 %v227, 4294901760
        %286 = vmatpush2.msra.mxu0 %v285
        %287 = vmatprep.subr.mxu0 0.0
        %v288 = vand.u32 %v226, 4294901760
        %289 = vmatpush2.msra.mxu0 %v288
        %290 = vmatprep.subr.mxu0 0.0
        %v291 = vand.u32 %v225, 4294901760
        %292 = vmatpush2.msra.mxu0 %v291
        %293 = vmatprep.subr.mxu0 0.0
        %v294 = vand.u32 %v224, 4294901760
        %295 = vmatpush2.msra.mxu0 %v294
        %296 = vmatprep.subr.mxu0 0.0
        %v297 = vand.u32 %v223, 4294901760
        %298 = vmatpush2.msra.mxu0 %v297
        %299 = vmatprep.subr.mxu0 0.0
        %v300 = vand.u32 %v222, 4294901760
        %301 = vmatpush2.msra.mxu0 %v300
        %302 = vmatprep.subr.mxu0 0.0
        %v303 = vand.u32 %v221, 4294901760
        %304 = vmatpush2.msra.mxu0 %v303
        %305 = vmatprep.subr.mxu0 0.0
        %v306 = vand.u32 %v220, 4294901760
        %307 = vmatpush2.msra.mxu0 %v306
        %308 = vmatprep.subr.mxu0 0.0
        %v309 = vand.u32 %v219, 4294901760
        %310 = vmatpush2.msra.mxu0 %v309
        %311 = vmatprep.subr.mxu0 0.0
        %v312 = vand.u32 %v218, 4294901760
        %313 = vmatpush2.msra.mxu0 %v312
        %314 = vmatprep.subr.mxu0 0.0
        %v315 = vand.u32 %v217, 4294901760
        %316 = vmatpush2.msra.mxu0 %v315
        %317 = vmatprep.subr.mxu0 0.0
        %v318 = vand.u32 %v216, 4294901760
        %319 = vmatpush2.msra.mxu0 %v318
        %320 = vmatprep.subr.mxu0 0.0
        %v321 = vand.u32 %v215, 4294901760
        %322 = vmatpush2.msra.mxu0 %v321
        %323 = vmatprep.subr.mxu0 0.0
        %v324 = vand.u32 %v214, 4294901760
        %325 = vmatpush2.msra.mxu0 %v324
        %v326 = vand.u32 %v197, 4294901760
        %v327 = vsub.f32 %v197, %v326
        %v328 = vand.u32 %v327, 4294901760
        %v329 = vsub.f32 %v327, %v328
        %v330 = vand.u32 %v329, 4294901760
        %331 = vmatprep.mubr.f32.mxu0 %v330
        %v332 = vand.u32 %v196, 4294901760
        %v333 = vsub.f32 %v196, %v332
        %v334 = vand.u32 %v333, 4294901760
        %v335 = vsub.f32 %v333, %v334
        %v336 = vand.u32 %v335, 4294901760
        %337 = vmatmul.mubr.f32.gmra.mxu0 %v336
        %v338 = vpop.f32.mrf.mxu0
        %v339 = vadd.f32 0.0, %v338
        %v340 = vpop.f32.mrf.mxu0
        %341 = vdwg.mxu0
        %342 = vmatprep.subr.mxu0 0.0
        %v343 = vand.u32 %v213, 4294901760
        %v344 = vsub.f32 %v213, %v343
        %v345 = vand.u32 %v344, 4294901760
        %v346 = vsub.f32 %v344, %v345
        %v347 = vand.u32 %v346, 4294901760
        %348 = vmatpush1.msra.mxu0 %v347
        %349 = vmatprep.subr.mxu0 0.0
        %v350 = vand.u32 %v212, 4294901760
        %v351 = vsub.f32 %v212, %v350
        %v352 = vand.u32 %v351, 4294901760
        %v353 = vsub.f32 %v351, %v352
        %v354 = vand.u32 %v353, 4294901760
        %355 = vmatpush1.msra.mxu0 %v354
        %356 = vmatprep.subr.mxu0 0.0
        %v357 = vand.u32 %v211, 4294901760
        %v358 = vsub.f32 %v211, %v357
        %v359 = vand.u32 %v358, 4294901760
        %v360 = vsub.f32 %v358, %v359
        %v361 = vand.u32 %v360, 4294901760
        %362 = vmatpush1.msra.mxu0 %v361
        %363 = vmatprep.subr.mxu0 0.0
        %v364 = vand.u32 %v210, 4294901760
        %v365 = vsub.f32 %v210, %v364
        %v366 = vand.u32 %v365, 4294901760
        %v367 = vsub.f32 %v365, %v366
        %v368 = vand.u32 %v367, 4294901760
        %369 = vmatpush1.msra.mxu0 %v368
        %370 = vmatprep.subr.mxu0 0.0
        %v371 = vand.u32 %v209, 4294901760
        %v372 = vsub.f32 %v209, %v371
        %v373 = vand.u32 %v372, 4294901760
        %v374 = vsub.f32 %v372, %v373
        %v375 = vand.u32 %v374, 4294901760
        %376 = vmatpush1.msra.mxu0 %v375
        %377 = vmatprep.subr.mxu0 0.0
        %v378 = vand.u32 %v208, 4294901760
        %v379 = vsub.f32 %v208, %v378
        %v380 = vand.u32 %v379, 4294901760
        %v381 = vsub.f32 %v379, %v380
        %v382 = vand.u32 %v381, 4294901760
        %383 = vmatpush1.msra.mxu0 %v382
        %384 = vmatprep.subr.mxu0 0.0
        %v385 = vand.u32 %v207, 4294901760
        %v386 = vsub.f32 %v207, %v385
        %v387 = vand.u32 %v386, 4294901760
        %v388 = vsub.f32 %v386, %v387
        %v389 = vand.u32 %v388, 4294901760
        %390 = vmatpush1.msra.mxu0 %v389
        %391 = vmatprep.subr.mxu0 0.0
        %v392 = vand.u32 %v206, 4294901760
        %v393 = vsub.f32 %v206, %v392
        %v394 = vand.u32 %v393, 4294901760
        %v395 = vsub.f32 %v393, %v394
        %v396 = vand.u32 %v395, 4294901760
        %397 = vmatpush1.msra.mxu0 %v396
        %398 = vmatprep.subr.mxu0 0.0
        %v399 = vand.u32 %v205, 4294901760
        %v400 = vsub.f32 %v205, %v399
        %v401 = vand.u32 %v400, 4294901760
        %v402 = vsub.f32 %v400, %v401
        %v403 = vand.u32 %v402, 4294901760
        %404 = vmatpush1.msra.mxu0 %v403
        %405 = vmatprep.subr.mxu0 0.0
        %v406 = vand.u32 %v204, 4294901760
        %v407 = vsub.f32 %v204, %v406
        %v408 = vand.u32 %v407, 4294901760
        %v409 = vsub.f32 %v407, %v408
        %v410 = vand.u32 %v409, 4294901760
        %411 = vmatpush1.msra.mxu0 %v410
        %412 = vmatprep.subr.mxu0 0.0
        %v413 = vand.u32 %v203, 4294901760
        %v414 = vsub.f32 %v203, %v413
        %v415 = vand.u32 %v414, 4294901760
        %v416 = vsub.f32 %v414, %v415
        %v417 = vand.u32 %v416, 4294901760
        %418 = vmatpush1.msra.mxu0 %v417
        %419 = vmatprep.subr.mxu0 0.0
        %v420 = vand.u32 %v202, 4294901760
        %v421 = vsub.f32 %v202, %v420
        %v422 = vand.u32 %v421, 4294901760
        %v423 = vsub.f32 %v421, %v422
        %v424 = vand.u32 %v423, 4294901760
        %425 = vmatpush1.msra.mxu0 %v424
        %426 = vmatprep.subr.mxu0 0.0
        %v427 = vand.u32 %v201, 4294901760
        %v428 = vsub.f32 %v201, %v427
        %v429 = vand.u32 %v428, 4294901760
        %v430 = vsub.f32 %v428, %v429
        %v431 = vand.u32 %v430, 4294901760
        %432 = vmatpush1.msra.mxu0 %v431
        %433 = vmatprep.subr.mxu0 0.0
        %v434 = vand.u32 %v200, 4294901760
        %v435 = vsub.f32 %v200, %v434
        %v436 = vand.u32 %v435, 4294901760
        %v437 = vsub.f32 %v435, %v436
        %v438 = vand.u32 %v437, 4294901760
        %439 = vmatpush1.msra.mxu0 %v438
        %440 = vmatprep.subr.mxu0 0.0
        %v441 = vand.u32 %v199, 4294901760
        %v442 = vsub.f32 %v199, %v441
        %v443 = vand.u32 %v442, 4294901760
        %v444 = vsub.f32 %v442, %v443
        %v445 = vand.u32 %v444, 4294901760
        %446 = vmatpush1.msra.mxu0 %v445
        %447 = vmatprep.subr.mxu0 0.0
        %v448 = vand.u32 %v198, 4294901760
        %v449 = vsub.f32 %v198, %v448
        %v450 = vand.u32 %v449, 4294901760
        %v451 = vsub.f32 %v449, %v450
        %v452 = vand.u32 %v451, 4294901760
        %453 = vmatpush1.msra.mxu0 %v452
        %454 = vmatprep.subr.mxu0 0.0
        %v455 = vand.u32 %v229, 4294901760
        %v456 = vsub.f32 %v229, %v455
        %v457 = vand.u32 %v456, 4294901760
        %v458 = vsub.f32 %v456, %v457
        %v459 = vand.u32 %v458, 4294901760
        %460 = vmatpush2.msra.mxu0 %v459
        %461 = vmatprep.subr.mxu0 0.0
        %v462 = vand.u32 %v228, 4294901760
        %v463 = vsub.f32 %v228, %v462
        %v464 = vand.u32 %v463, 4294901760
        %v465 = vsub.f32 %v463, %v464
        %v466 = vand.u32 %v465, 4294901760
        %467 = vmatpush2.msra.mxu0 %v466
        %468 = vmatprep.subr.mxu0 0.0
        %v469 = vand.u32 %v227, 4294901760
        %v470 = vsub.f32 %v227, %v469
        %v471 = vand.u32 %v470, 4294901760
        %v472 = vsub.f32 %v470, %v471
        %v473 = vand.u32 %v472, 4294901760
        %474 = vmatpush2.msra.mxu0 %v473
        %475 = vmatprep.subr.mxu0 0.0
        %v476 = vand.u32 %v226, 4294901760
        %v477 = vsub.f32 %v226, %v476
        %v478 = vand.u32 %v477, 4294901760
        %v479 = vsub.f32 %v477, %v478
        %v480 = vand.u32 %v479, 4294901760
        %481 = vmatpush2.msra.mxu0 %v480
        %482 = vmatprep.subr.mxu0 0.0
        %v483 = vand.u32 %v225, 4294901760
        %v484 = vsub.f32 %v225, %v483
        %v485 = vand.u32 %v484, 4294901760
        %v486 = vsub.f32 %v484, %v485
        %v487 = vand.u32 %v486, 4294901760
        %488 = vmatpush2.msra.mxu0 %v487
        %489 = vmatprep.subr.mxu0 0.0
        %v490 = vand.u32 %v224, 4294901760
        %v491 = vsub.f32 %v224, %v490
        %v492 = vand.u32 %v491, 4294901760
        %v493 = vsub.f32 %v491, %v492
        %v494 = vand.u32 %v493, 4294901760
        %495 = vmatpush2.msra.mxu0 %v494
        %496 = vmatprep.subr.mxu0 0.0
        %v497 = vand.u32 %v223, 4294901760
        %v498 = vsub.f32 %v223, %v497
        %v499 = vand.u32 %v498, 4294901760
        %v500 = vsub.f32 %v498, %v499
        %v501 = vand.u32 %v500, 4294901760
        %502 = vmatpush2.msra.mxu0 %v501
        %503 = vmatprep.subr.mxu0 0.0
        %v504 = vand.u32 %v222, 4294901760
        %v505 = vsub.f32 %v222, %v504
        %v506 = vand.u32 %v505, 4294901760
        %v507 = vsub.f32 %v505, %v506
        %v508 = vand.u32 %v507, 4294901760
        %509 = vmatpush2.msra.mxu0 %v508
        %510 = vmatprep.subr.mxu0 0.0
        %v511 = vand.u32 %v221, 4294901760
        %v512 = vsub.f32 %v221, %v511
        %v513 = vand.u32 %v512, 4294901760
        %v514 = vsub.f32 %v512, %v513
        %v515 = vand.u32 %v514, 4294901760
        %516 = vmatpush2.msra.mxu0 %v515
        %517 = vmatprep.subr.mxu0 0.0
        %v518 = vand.u32 %v220, 4294901760
        %v519 = vsub.f32 %v220, %v518
        %v520 = vand.u32 %v519, 4294901760
        %v521 = vsub.f32 %v519, %v520
        %v522 = vand.u32 %v521, 4294901760
        %523 = vmatpush2.msra.mxu0 %v522
        %524 = vmatprep.subr.mxu0 0.0
        %v525 = vand.u32 %v219, 4294901760
        %v526 = vsub.f32 %v219, %v525
        %v527 = vand.u32 %v526, 4294901760
        %v528 = vsub.f32 %v526, %v527
        %v529 = vand.u32 %v528, 4294901760
        %530 = vmatpush2.msra.mxu0 %v529
        %531 = vmatprep.subr.mxu0 0.0
        %v532 = vand.u32 %v218, 4294901760
        %v533 = vsub.f32 %v218, %v532
        %v534 = vand.u32 %v533, 4294901760
        %v535 = vsub.f32 %v533, %v534
        %v536 = vand.u32 %v535, 4294901760
        %537 = vmatpush2.msra.mxu0 %v536
        %538 = vmatprep.subr.mxu0 0.0
        %v539 = vand.u32 %v217, 4294901760
        %v540 = vsub.f32 %v217, %v539
        %v541 = vand.u32 %v540, 4294901760
        %v542 = vsub.f32 %v540, %v541
        %v543 = vand.u32 %v542, 4294901760
        %544 = vmatpush2.msra.mxu0 %v543
        %545 = vmatprep.subr.mxu0 0.0
        %v546 = vand.u32 %v216, 4294901760
        %v547 = vsub.f32 %v216, %v546
        %v548 = vand.u32 %v547, 4294901760
        %v549 = vsub.f32 %v547, %v548
        %v550 = vand.u32 %v549, 4294901760
        %551 = vmatpush2.msra.mxu0 %v550
        %552 = vmatprep.subr.mxu0 0.0
        %v553 = vand.u32 %v215, 4294901760
        %v554 = vsub.f32 %v215, %v553
        %v555 = vand.u32 %v554, 4294901760
        %v556 = vsub.f32 %v554, %v555
        %v557 = vand.u32 %v556, 4294901760
        %558 = vmatpush2.msra.mxu0 %v557
        %559 = vmatprep.subr.mxu0 0.0
        %v560 = vand.u32 %v214, 4294901760
        %v561 = vsub.f32 %v214, %v560
        %v562 = vand.u32 %v561, 4294901760
        %v563 = vsub.f32 %v561, %v562
        %v564 = vand.u32 %v563, 4294901760
        %565 = vmatpush2.msra.mxu0 %v564
        %v566 = vand.u32 %v197, 4294901760
        %567 = vmatprep.mubr.f32.mxu0 %v566
        %v568 = vand.u32 %v196, 4294901760
        %569 = vmatmul.mubr.f32.gmra.mxu0 %v568
        %v570 = vpop.f32.mrf.mxu0
        %v571 = vadd.f32 %v339, %v570
        %v572 = vpop.f32.mrf.mxu0
        %573 = vdwg.mxu0
        %574 = vmatprep.subr.mxu0 0.0
        %v575 = vand.u32 %v213, 4294901760
        %v576 = vsub.f32 %v213, %v575
        %577 = vmatpush1.msra.mxu0 %v576
        %578 = vmatprep.subr.mxu0 0.0
        %v579 = vand.u32 %v212, 4294901760
        %v580 = vsub.f32 %v212, %v579
        %581 = vmatpush1.msra.mxu0 %v580
        %582 = vmatprep.subr.mxu0 0.0
        %v583 = vand.u32 %v211, 4294901760
        %v584 = vsub.f32 %v211, %v583
        %585 = vmatpush1.msra.mxu0 %v584
        %586 = vmatprep.subr.mxu0 0.0
        %v587 = vand.u32 %v210, 4294901760
        %v588 = vsub.f32 %v210, %v587
        %589 = vmatpush1.msra.mxu0 %v588
        %590 = vmatprep.subr.mxu0 0.0
        %v591 = vand.u32 %v209, 4294901760
        %v592 = vsub.f32 %v209, %v591
        %593 = vmatpush1.msra.mxu0 %v592
        %594 = vmatprep.subr.mxu0 0.0
        %v595 = vand.u32 %v208, 4294901760
        %v596 = vsub.f32 %v208, %v595
        %597 = vmatpush1.msra.mxu0 %v596
        %598 = vmatprep.subr.mxu0 0.0
        %v599 = vand.u32 %v207, 4294901760
        %v600 = vsub.f32 %v207, %v599
        %601 = vmatpush1.msra.mxu0 %v600
        %602 = vmatprep.subr.mxu0 0.0
        %v603 = vand.u32 %v206, 4294901760
        %v604 = vsub.f32 %v206, %v603
        %605 = vmatpush1.msra.mxu0 %v604
        %606 = vmatprep.subr.mxu0 0.0
        %v607 = vand.u32 %v205, 4294901760
        %v608 = vsub.f32 %v205, %v607
        %609 = vmatpush1.msra.mxu0 %v608
        %610 = vmatprep.subr.mxu0 0.0
        %v611 = vand.u32 %v204, 4294901760
        %v612 = vsub.f32 %v204, %v611
        %613 = vmatpush1.msra.mxu0 %v612
        %614 = vmatprep.subr.mxu0 0.0
        %v615 = vand.u32 %v203, 4294901760
        %v616 = vsub.f32 %v203, %v615
        %617 = vmatpush1.msra.mxu0 %v616
        %618 = vmatprep.subr.mxu0 0.0
        %v619 = vand.u32 %v202, 4294901760
        %v620 = vsub.f32 %v202, %v619
        %621 = vmatpush1.msra.mxu0 %v620
        %622 = vmatprep.subr.mxu0 0.0
        %v623 = vand.u32 %v201, 4294901760
        %v624 = vsub.f32 %v201, %v623
        %625 = vmatpush1.msra.mxu0 %v624
        %626 = vmatprep.subr.mxu0 0.0
        %v627 = vand.u32 %v200, 4294901760
        %v628 = vsub.f32 %v200, %v627
        %629 = vmatpush1.msra.mxu0 %v628
        %630 = vmatprep.subr.mxu0 0.0
        %v631 = vand.u32 %v199, 4294901760
        %v632 = vsub.f32 %v199, %v631
        %633 = vmatpush1.msra.mxu0 %v632
        %634 = vmatprep.subr.mxu0 0.0
        %v635 = vand.u32 %v198, 4294901760
        %v636 = vsub.f32 %v198, %v635
        %637 = vmatpush1.msra.mxu0 %v636
        %638 = vmatprep.subr.mxu0 0.0
        %v639 = vand.u32 %v229, 4294901760
        %v640 = vsub.f32 %v229, %v639
        %641 = vmatpush2.msra.mxu0 %v640
        %642 = vmatprep.subr.mxu0 0.0
        %v643 = vand.u32 %v228, 4294901760
        %v644 = vsub.f32 %v228, %v643
        %645 = vmatpush2.msra.mxu0 %v644
        %646 = vmatprep.subr.mxu0 0.0
        %v647 = vand.u32 %v227, 4294901760
        %v648 = vsub.f32 %v227, %v647
        %649 = vmatpush2.msra.mxu0 %v648
        %650 = vmatprep.subr.mxu0 0.0
        %v651 = vand.u32 %v226, 4294901760
        %v652 = vsub.f32 %v226, %v651
        %653 = vmatpush2.msra.mxu0 %v652
        %654 = vmatprep.subr.mxu0 0.0
        %v655 = vand.u32 %v225, 4294901760
        %v656 = vsub.f32 %v225, %v655
        %657 = vmatpush2.msra.mxu0 %v656
        %658 = vmatprep.subr.mxu0 0.0
        %v659 = vand.u32 %v224, 4294901760
        %v660 = vsub.f32 %v224, %v659
        %661 = vmatpush2.msra.mxu0 %v660
        %662 = vmatprep.subr.mxu0 0.0
        %v663 = vand.u32 %v223, 4294901760
        %v664 = vsub.f32 %v223, %v663
        %665 = vmatpush2.msra.mxu0 %v664
        %666 = vmatprep.subr.mxu0 0.0
        %v667 = vand.u32 %v222, 4294901760
        %v668 = vsub.f32 %v222, %v667
        %669 = vmatpush2.msra.mxu0 %v668
        %670 = vmatprep.subr.mxu0 0.0
        %v671 = vand.u32 %v221, 4294901760
        %v672 = vsub.f32 %v221, %v671
        %673 = vmatpush2.msra.mxu0 %v672
        %674 = vmatprep.subr.mxu0 0.0
        %v675 = vand.u32 %v220, 4294901760
        %v676 = vsub.f32 %v220, %v675
        %677 = vmatpush2.msra.mxu0 %v676
        %678 = vmatprep.subr.mxu0 0.0
        %v679 = vand.u32 %v219, 4294901760
        %v680 = vsub.f32 %v219, %v679
        %681 = vmatpush2.msra.mxu0 %v680
        %682 = vmatprep.subr.mxu0 0.0
        %v683 = vand.u32 %v218, 4294901760
        %v684 = vsub.f32 %v218, %v683
        %685 = vmatpush2.msra.mxu0 %v684
        %686 = vmatprep.subr.mxu0 0.0
        %v687 = vand.u32 %v217, 4294901760
        %v688 = vsub.f32 %v217, %v687
        %689 = vmatpush2.msra.mxu0 %v688
        %690 = vmatprep.subr.mxu0 0.0
        %v691 = vand.u32 %v216, 4294901760
        %v692 = vsub.f32 %v216, %v691
        %693 = vmatpush2.msra.mxu0 %v692
        %694 = vmatprep.subr.mxu0 0.0
        %v695 = vand.u32 %v215, 4294901760
        %v696 = vsub.f32 %v215, %v695
        %697 = vmatpush2.msra.mxu0 %v696
        %698 = vmatprep.subr.mxu0 0.0
        %v699 = vand.u32 %v214, 4294901760
        %v700 = vsub.f32 %v214, %v699
        %701 = vmatpush2.msra.mxu0 %v700
        %v702 = vand.u32 %v197, 4294901760
        %v703 = vsub.f32 %v197, %v702
        %704 = vmatprep.mubr.f32.mxu0 %v703
        %v705 = vand.u32 %v196, 4294901760
        %v706 = vsub.f32 %v196, %v705
        %707 = vmatmul.mubr.f32.gmra.mxu0 %v706
        %v708 = vpop.f32.mrf.mxu0
        %v709 = vadd.f32 %v571, %v708
        %v710 = vpop.f32.mrf.mxu0
        %711 = vdwg.mxu0
        %712 = vmatprep.subr.mxu0 0.0
        %v713 = vand.u32 %v213, 4294901760
        %714 = vmatpush1.msra.mxu0 %v713
        %715 = vmatprep.subr.mxu0 0.0
        %v716 = vand.u32 %v212, 4294901760
        %717 = vmatpush1.msra.mxu0 %v716
        %718 = vmatprep.subr.mxu0 0.0
        %v719 = vand.u32 %v211, 4294901760
        %720 = vmatpush1.msra.mxu0 %v719
        %721 = vmatprep.subr.mxu0 0.0
        %v722 = vand.u32 %v210, 4294901760
        %723 = vmatpush1.msra.mxu0 %v722
        %724 = vmatprep.subr.mxu0 0.0
        %v725 = vand.u32 %v209, 4294901760
        %726 = vmatpush1.msra.mxu0 %v725
        %727 = vmatprep.subr.mxu0 0.0
        %v728 = vand.u32 %v208, 4294901760
        %729 = vmatpush1.msra.mxu0 %v728
        %730 = vmatprep.subr.mxu0 0.0
        %v731 = vand.u32 %v207, 4294901760
        %732 = vmatpush1.msra.mxu0 %v731
        %733 = vmatprep.subr.mxu0 0.0
        %v734 = vand.u32 %v206, 4294901760
        %735 = vmatpush1.msra.mxu0 %v734
        %736 = vmatprep.subr.mxu0 0.0
        %v737 = vand.u32 %v205, 4294901760
        %738 = vmatpush1.msra.mxu0 %v737
        %739 = vmatprep.subr.mxu0 0.0
        %v740 = vand.u32 %v204, 4294901760
        %741 = vmatpush1.msra.mxu0 %v740
        %742 = vmatprep.subr.mxu0 0.0
        %v743 = vand.u32 %v203, 4294901760
        %744 = vmatpush1.msra.mxu0 %v743
        %745 = vmatprep.subr.mxu0 0.0
        %v746 = vand.u32 %v202, 4294901760
        %747 = vmatpush1.msra.mxu0 %v746
        %748 = vmatprep.subr.mxu0 0.0
        %v749 = vand.u32 %v201, 4294901760
        %750 = vmatpush1.msra.mxu0 %v749
        %751 = vmatprep.subr.mxu0 0.0
        %v752 = vand.u32 %v200, 4294901760
        %753 = vmatpush1.msra.mxu0 %v752
        %754 = vmatprep.subr.mxu0 0.0
        %v755 = vand.u32 %v199, 4294901760
        %756 = vmatpush1.msra.mxu0 %v755
        %757 = vmatprep.subr.mxu0 0.0
        %v758 = vand.u32 %v198, 4294901760
        %759 = vmatpush1.msra.mxu0 %v758
        %760 = vmatprep.subr.mxu0 0.0
        %v761 = vand.u32 %v229, 4294901760
        %762 = vmatpush2.msra.mxu0 %v761
        %763 = vmatprep.subr.mxu0 0.0
        %v764 = vand.u32 %v228, 4294901760
        %765 = vmatpush2.msra.mxu0 %v764
        %766 = vmatprep.subr.mxu0 0.0
        %v767 = vand.u32 %v227, 4294901760
        %768 = vmatpush2.msra.mxu0 %v767
        %769 = vmatprep.subr.mxu0 0.0
        %v770 = vand.u32 %v226, 4294901760
        %771 = vmatpush2.msra.mxu0 %v770
        %772 = vmatprep.subr.mxu0 0.0
        %v773 = vand.u32 %v225, 4294901760
        %774 = vmatpush2.msra.mxu0 %v773
        %775 = vmatprep.subr.mxu0 0.0
        %v776 = vand.u32 %v224, 4294901760
        %777 = vmatpush2.msra.mxu0 %v776
        %778 = vmatprep.subr.mxu0 0.0
        %v779 = vand.u32 %v223, 4294901760
        %780 = vmatpush2.msra.mxu0 %v779
        %781 = vmatprep.subr.mxu0 0.0
        %v782 = vand.u32 %v222, 4294901760
        %783 = vmatpush2.msra.mxu0 %v782
        %784 = vmatprep.subr.mxu0 0.0
        %v785 = vand.u32 %v221, 4294901760
        %786 = vmatpush2.msra.mxu0 %v785
        %787 = vmatprep.subr.mxu0 0.0
        %v788 = vand.u32 %v220, 4294901760
        %789 = vmatpush2.msra.mxu0 %v788
        %790 = vmatprep.subr.mxu0 0.0
        %v791 = vand.u32 %v219, 4294901760
        %792 = vmatpush2.msra.mxu0 %v791
        %793 = vmatprep.subr.mxu0 0.0
        %v794 = vand.u32 %v218, 4294901760
        %795 = vmatpush2.msra.mxu0 %v794
        %796 = vmatprep.subr.mxu0 0.0
        %v797 = vand.u32 %v217, 4294901760
        %798 = vmatpush2.msra.mxu0 %v797
        %799 = vmatprep.subr.mxu0 0.0
        %v800 = vand.u32 %v216, 4294901760
        %801 = vmatpush2.msra.mxu0 %v800
        %802 = vmatprep.subr.mxu0 0.0
        %v803 = vand.u32 %v215, 4294901760
        %804 = vmatpush2.msra.mxu0 %v803
        %805 = vmatprep.subr.mxu0 0.0
        %v806 = vand.u32 %v214, 4294901760
        %807 = vmatpush2.msra.mxu0 %v806
        %v808 = vand.u32 %v197, 4294901760
        %v809 = vsub.f32 %v197, %v808
        %v810 = vand.u32 %v809, 4294901760
        %811 = vmatprep.mubr.f32.mxu0 %v810
        %v812 = vand.u32 %v196, 4294901760
        %v813 = vsub.f32 %v196, %v812
        %v814 = vand.u32 %v813, 4294901760
        %815 = vmatmul.mubr.f32.gmra.mxu0 %v814
        %v816 = vpop.f32.mrf.mxu0
        %v817 = vadd.f32 %v709, %v816
        %v818 = vpop.f32.mrf.mxu0
        %819 = vdwg.mxu0
        %820 = vmatprep.subr.mxu0 0.0
        %v821 = vand.u32 %v213, 4294901760
        %v822 = vsub.f32 %v213, %v821
        %v823 = vand.u32 %v822, 4294901760
        %824 = vmatpush1.msra.mxu0 %v823
        %825 = vmatprep.subr.mxu0 0.0
        %v826 = vand.u32 %v212, 4294901760
        %v827 = vsub.f32 %v212, %v826
        %v828 = vand.u32 %v827, 4294901760
        %829 = vmatpush1.msra.mxu0 %v828
        %830 = vmatprep.subr.mxu0 0.0
        %v831 = vand.u32 %v211, 4294901760
        %v832 = vsub.f32 %v211, %v831
        %v833 = vand.u32 %v832, 4294901760
        %834 = vmatpush1.msra.mxu0 %v833
        %835 = vmatprep.subr.mxu0 0.0
        %v836 = vand.u32 %v210, 4294901760
        %v837 = vsub.f32 %v210, %v836
        %v838 = vand.u32 %v837, 4294901760
        %839 = vmatpush1.msra.mxu0 %v838
        %840 = vmatprep.subr.mxu0 0.0
        %v841 = vand.u32 %v209, 4294901760
        %v842 = vsub.f32 %v209, %v841
        %v843 = vand.u32 %v842, 4294901760
        %844 = vmatpush1.msra.mxu0 %v843
        %845 = vmatprep.subr.mxu0 0.0
        %v846 = vand.u32 %v208, 4294901760
        %v847 = vsub.f32 %v208, %v846
        %v848 = vand.u32 %v847, 4294901760
        %849 = vmatpush1.msra.mxu0 %v848
        %850 = vmatprep.subr.mxu0 0.0
        %v851 = vand.u32 %v207, 4294901760
        %v852 = vsub.f32 %v207, %v851
        %v853 = vand.u32 %v852, 4294901760
        %854 = vmatpush1.msra.mxu0 %v853
        %855 = vmatprep.subr.mxu0 0.0
        %v856 = vand.u32 %v206, 4294901760
        %v857 = vsub.f32 %v206, %v856
        %v858 = vand.u32 %v857, 4294901760
        %859 = vmatpush1.msra.mxu0 %v858
        %860 = vmatprep.subr.mxu0 0.0
        %v861 = vand.u32 %v205, 4294901760
        %v862 = vsub.f32 %v205, %v861
        %v863 = vand.u32 %v862, 4294901760
        %864 = vmatpush1.msra.mxu0 %v863
        %865 = vmatprep.subr.mxu0 0.0
        %v866 = vand.u32 %v204, 4294901760
        %v867 = vsub.f32 %v204, %v866
        %v868 = vand.u32 %v867, 4294901760
        %869 = vmatpush1.msra.mxu0 %v868
        %870 = vmatprep.subr.mxu0 0.0
        %v871 = vand.u32 %v203, 4294901760
        %v872 = vsub.f32 %v203, %v871
        %v873 = vand.u32 %v872, 4294901760
        %874 = vmatpush1.msra.mxu0 %v873
        %875 = vmatprep.subr.mxu0 0.0
        %v876 = vand.u32 %v202, 4294901760
        %v877 = vsub.f32 %v202, %v876
        %v878 = vand.u32 %v877, 4294901760
        %879 = vmatpush1.msra.mxu0 %v878
        %880 = vmatprep.subr.mxu0 0.0
        %v881 = vand.u32 %v201, 4294901760
        %v882 = vsub.f32 %v201, %v881
        %v883 = vand.u32 %v882, 4294901760
        %884 = vmatpush1.msra.mxu0 %v883
        %885 = vmatprep.subr.mxu0 0.0
        %v886 = vand.u32 %v200, 4294901760
        %v887 = vsub.f32 %v200, %v886
        %v888 = vand.u32 %v887, 4294901760
        %889 = vmatpush1.msra.mxu0 %v888
        %890 = vmatprep.subr.mxu0 0.0
        %v891 = vand.u32 %v199, 4294901760
        %v892 = vsub.f32 %v199, %v891
        %v893 = vand.u32 %v892, 4294901760
        %894 = vmatpush1.msra.mxu0 %v893
        %895 = vmatprep.subr.mxu0 0.0
        %v896 = vand.u32 %v198, 4294901760
        %v897 = vsub.f32 %v198, %v896
        %v898 = vand.u32 %v897, 4294901760
        %899 = vmatpush1.msra.mxu0 %v898
        %900 = vmatprep.subr.mxu0 0.0
        %v901 = vand.u32 %v229, 4294901760
        %v902 = vsub.f32 %v229, %v901
        %v903 = vand.u32 %v902, 4294901760
        %904 = vmatpush2.msra.mxu0 %v903
        %905 = vmatprep.subr.mxu0 0.0
        %v906 = vand.u32 %v228, 4294901760
        %v907 = vsub.f32 %v228, %v906
        %v908 = vand.u32 %v907, 4294901760
        %909 = vmatpush2.msra.mxu0 %v908
        %910 = vmatprep.subr.mxu0 0.0
        %v911 = vand.u32 %v227, 4294901760
        %v912 = vsub.f32 %v227, %v911
        %v913 = vand.u32 %v912, 4294901760
        %914 = vmatpush2.msra.mxu0 %v913
        %915 = vmatprep.subr.mxu0 0.0
        %v916 = vand.u32 %v226, 4294901760
        %v917 = vsub.f32 %v226, %v916
        %v918 = vand.u32 %v917, 4294901760
        %919 = vmatpush2.msra.mxu0 %v918
        %920 = vmatprep.subr.mxu0 0.0
        %v921 = vand.u32 %v225, 4294901760
        %v922 = vsub.f32 %v225, %v921
        %v923 = vand.u32 %v922, 4294901760
        %924 = vmatpush2.msra.mxu0 %v923
        %925 = vmatprep.subr.mxu0 0.0
        %v926 = vand.u32 %v224, 4294901760
        %v927 = vsub.f32 %v224, %v926
        %v928 = vand.u32 %v927, 4294901760
        %929 = vmatpush2.msra.mxu0 %v928
        %930 = vmatprep.subr.mxu0 0.0
        %v931 = vand.u32 %v223, 4294901760
        %v932 = vsub.f32 %v223, %v931
        %v933 = vand.u32 %v932, 4294901760
        %934 = vmatpush2.msra.mxu0 %v933
        %935 = vmatprep.subr.mxu0 0.0
        %v936 = vand.u32 %v222, 4294901760
        %v937 = vsub.f32 %v222, %v936
        %v938 = vand.u32 %v937, 4294901760
        %939 = vmatpush2.msra.mxu0 %v938
        %940 = vmatprep.subr.mxu0 0.0
        %v941 = vand.u32 %v221, 4294901760
        %v942 = vsub.f32 %v221, %v941
        %v943 = vand.u32 %v942, 4294901760
        %944 = vmatpush2.msra.mxu0 %v943
        %945 = vmatprep.subr.mxu0 0.0
        %v946 = vand.u32 %v220, 4294901760
        %v947 = vsub.f32 %v220, %v946
        %v948 = vand.u32 %v947, 4294901760
        %949 = vmatpush2.msra.mxu0 %v948
        %950 = vmatprep.subr.mxu0 0.0
        %v951 = vand.u32 %v219, 4294901760
        %v952 = vsub.f32 %v219, %v951
        %v953 = vand.u32 %v952, 4294901760
        %954 = vmatpush2.msra.mxu0 %v953
        %955 = vmatprep.subr.mxu0 0.0
        %v956 = vand.u32 %v218, 4294901760
        %v957 = vsub.f32 %v218, %v956
        %v958 = vand.u32 %v957, 4294901760
        %959 = vmatpush2.msra.mxu0 %v958
        %960 = vmatprep.subr.mxu0 0.0
        %v961 = vand.u32 %v217, 4294901760
        %v962 = vsub.f32 %v217, %v961
        %v963 = vand.u32 %v962, 4294901760
        %964 = vmatpush2.msra.mxu0 %v963
        %965 = vmatprep.subr.mxu0 0.0
        %v966 = vand.u32 %v216, 4294901760
        %v967 = vsub.f32 %v216, %v966
        %v968 = vand.u32 %v967, 4294901760
        %969 = vmatpush2.msra.mxu0 %v968
        %970 = vmatprep.subr.mxu0 0.0
        %v971 = vand.u32 %v215, 4294901760
        %v972 = vsub.f32 %v215, %v971
        %v973 = vand.u32 %v972, 4294901760
        %974 = vmatpush2.msra.mxu0 %v973
        %975 = vmatprep.subr.mxu0 0.0
        %v976 = vand.u32 %v214, 4294901760
        %v977 = vsub.f32 %v214, %v976
        %v978 = vand.u32 %v977, 4294901760
        %979 = vmatpush2.msra.mxu0 %v978
        %v980 = vand.u32 %v197, 4294901760
        %981 = vmatprep.mubr.f32.mxu0 %v980
        %v982 = vand.u32 %v196, 4294901760
        %983 = vmatmul.mubr.f32.gmra.mxu0 %v982
        %v984 = vpop.f32.mrf.mxu0
        %v985 = vadd.f32 %v817, %v984
        %v986 = vpop.f32.mrf.mxu0
        %987 = vdwg.mxu0
        %988 = vmatprep.subr.mxu0 0.0
        %v989 = vand.u32 %v213, 4294901760
        %990 = vmatpush1.msra.mxu0 %v989
        %991 = vmatprep.subr.mxu0 0.0
        %v992 = vand.u32 %v212, 4294901760
        %993 = vmatpush1.msra.mxu0 %v992
        %994 = vmatprep.subr.mxu0 0.0
        %v995 = vand.u32 %v211, 4294901760
        %996 = vmatpush1.msra.mxu0 %v995
        %997 = vmatprep.subr.mxu0 0.0
        %v998 = vand.u32 %v210, 4294901760
        %999 = vmatpush1.msra.mxu0 %v998
        %1000 = vmatprep.subr.mxu0 0.0
        %v1001 = vand.u32 %v209, 4294901760
        %1002 = vmatpush1.msra.mxu0 %v1001
        %1003 = vmatprep.subr.mxu0 0.0
        %v1004 = vand.u32 %v208, 4294901760
        %1005 = vmatpush1.msra.mxu0 %v1004
        %1006 = vmatprep.subr.mxu0 0.0
        %v1007 = vand.u32 %v207, 4294901760
        %1008 = vmatpush1.msra.mxu0 %v1007
        %1009 = vmatprep.subr.mxu0 0.0
        %v1010 = vand.u32 %v206, 4294901760
        %1011 = vmatpush1.msra.mxu0 %v1010
        %1012 = vmatprep.subr.mxu0 0.0
        %v1013 = vand.u32 %v205, 4294901760
        %1014 = vmatpush1.msra.mxu0 %v1013
        %1015 = vmatprep.subr.mxu0 0.0
        %v1016 = vand.u32 %v204, 4294901760
        %1017 = vmatpush1.msra.mxu0 %v1016
        %1018 = vmatprep.subr.mxu0 0.0
        %v1019 = vand.u32 %v203, 4294901760
        %1020 = vmatpush1.msra.mxu0 %v1019
        %1021 = vmatprep.subr.mxu0 0.0
        %v1022 = vand.u32 %v202, 4294901760
        %1023 = vmatpush1.msra.mxu0 %v1022
        %1024 = vmatprep.subr.mxu0 0.0
        %v1025 = vand.u32 %v201, 4294901760
        %1026 = vmatpush1.msra.mxu0 %v1025
        %1027 = vmatprep.subr.mxu0 0.0
        %v1028 = vand.u32 %v200, 4294901760
        %1029 = vmatpush1.msra.mxu0 %v1028
        %1030 = vmatprep.subr.mxu0 0.0
        %v1031 = vand.u32 %v199, 4294901760
        %1032 = vmatpush1.msra.mxu0 %v1031
        %1033 = vmatprep.subr.mxu0 0.0
        %v1034 = vand.u32 %v198, 4294901760
        %1035 = vmatpush1.msra.mxu0 %v1034
        %1036 = vmatprep.subr.mxu0 0.0
        %v1037 = vand.u32 %v229, 4294901760
        %1038 = vmatpush2.msra.mxu0 %v1037
        %1039 = vmatprep.subr.mxu0 0.0
        %v1040 = vand.u32 %v228, 4294901760
        %1041 = vmatpush2.msra.mxu0 %v1040
        %1042 = vmatprep.subr.mxu0 0.0
        %v1043 = vand.u32 %v227, 4294901760
        %1044 = vmatpush2.msra.mxu0 %v1043
        %1045 = vmatprep.subr.mxu0 0.0
        %v1046 = vand.u32 %v226, 4294901760
        %1047 = vmatpush2.msra.mxu0 %v1046
        %1048 = vmatprep.subr.mxu0 0.0
        %v1049 = vand.u32 %v225, 4294901760
        %1050 = vmatpush2.msra.mxu0 %v1049
        %1051 = vmatprep.subr.mxu0 0.0
        %v1052 = vand.u32 %v224, 4294901760
        %1053 = vmatpush2.msra.mxu0 %v1052
        %1054 = vmatprep.subr.mxu0 0.0
        %v1055 = vand.u32 %v223, 4294901760
        %1056 = vmatpush2.msra.mxu0 %v1055
        %1057 = vmatprep.subr.mxu0 0.0
        %v1058 = vand.u32 %v222, 4294901760
        %1059 = vmatpush2.msra.mxu0 %v1058
        %1060 = vmatprep.subr.mxu0 0.0
        %v1061 = vand.u32 %v221, 4294901760
        %1062 = vmatpush2.msra.mxu0 %v1061
        %1063 = vmatprep.subr.mxu0 0.0
        %v1064 = vand.u32 %v220, 4294901760
        %1065 = vmatpush2.msra.mxu0 %v1064
        %1066 = vmatprep.subr.mxu0 0.0
        %v1067 = vand.u32 %v219, 4294901760
        %1068 = vmatpush2.msra.mxu0 %v1067
        %1069 = vmatprep.subr.mxu0 0.0
        %v1070 = vand.u32 %v218, 4294901760
        %1071 = vmatpush2.msra.mxu0 %v1070
        %1072 = vmatprep.subr.mxu0 0.0
        %v1073 = vand.u32 %v217, 4294901760
        %1074 = vmatpush2.msra.mxu0 %v1073
        %1075 = vmatprep.subr.mxu0 0.0
        %v1076 = vand.u32 %v216, 4294901760
        %1077 = vmatpush2.msra.mxu0 %v1076
        %1078 = vmatprep.subr.mxu0 0.0
        %v1079 = vand.u32 %v215, 4294901760
        %1080 = vmatpush2.msra.mxu0 %v1079
        %1081 = vmatprep.subr.mxu0 0.0
        %v1082 = vand.u32 %v214, 4294901760
        %1083 = vmatpush2.msra.mxu0 %v1082
        %v1084 = vand.u32 %v197, 4294901760
        %1085 = vmatprep.mubr.f32.mxu0 %v1084
        %v1086 = vand.u32 %v196, 4294901760
        %1087 = vmatmul.mubr.f32.gmra.mxu0 %v1086
        %v1088 = vpop.f32.mrf.mxu0
        %v1089 = vadd.f32 %v985, %v1088
        %v1090 = vpop.f32.mrf.mxu0
        %1091 = vdwg.mxu0
        %1092 = vst [vmem:[%s195] sm:$0xff] %v1089
        %s1093 = sand.u32 %s94, 1
        %s1094 = scalar_lea.sflag [#allocation4], %s1093
        %s1095 = sand.u32 %s94, 1
        %s1096 = smul.addr %s1095, 8
        %s1097 = scalar_lea.vmem [#allocation7], %s1096
        // Predicated region
        $region37: #{_resize_combined_pallas.1} parent=27 // pred_check
          %p1098 = pneg %p104
        $region38: #{_resize_combined_pallas.1} parent=27 // pred_check_branch
          %1100 = sbr.rel (%p1098) target = $region40
        $region39: #{_resize_combined_pallas.1} parent=27 // pred_region
          %s1102 = ssub.s32 128, 128
          %1103 = vsyncadd %s1094, %s1102
          %s1104 = smul.addr %s24, 2
          %s1105 = sadd.s32 %s25, %s1104
          %s1106 = smul.addr %s1105, 128
          %s1107 = scalar_lea.hbm %s2, %s1106
          %s1109 = sshll.u32 %s1097, 4
          %s1110 = int_to_ptr.vmem [resolvable:$true] %s1109
          %1112 = dma.vmem_to_hbm [thread:$0]  %s1110, 128, %s1107, %s1094
        $region40: #{_resize_combined_pallas.1} parent=27 // pred_fallthru
          _
      $region28: #{_resize_combined_pallas.1} parent=5 // pred_fallthru
        _
      %p1113 = scmp.le.s32.totalorder 2, %s15
      // Predicated region
      $region41: #{_resize_combined_pallas.1} parent=5 // pred_check
        %p1114 = pneg %p1113
      $region42: #{_resize_combined_pallas.1} parent=5 // pred_check_branch
        %1116 = sbr.rel (%p1114) target = $region44
      $region43: #{_resize_combined_pallas.1} parent=5 // pred_region
        %s1117 = ssub.s32 %s15, 2
        // Predicated region
        $region45: #{_resize_combined_pallas.1} parent=43 // pred_check
          %p1118 = pneg %p110
        $region46: #{_resize_combined_pallas.1} parent=43 // pred_check_branch
          %1120 = sbr.rel (%p1118) target = $region48
        $region47: #{_resize_combined_pallas.1} parent=43 // pred_region
          %s1121 = sand.u32 %s95, 1
          %s1122 = scalar_lea.sflag [#allocation4], %s1121
          %s1123 = sand.u32 %s95, 1
          %s1124 = smul.addr %s1123, 8
          %s1125 = scalar_lea.vmem [#allocation7], %s1124
          %1126 = dma.done %s1122, 128
        $region48: #{_resize_combined_pallas.1} parent=43 // pred_fallthru
          _
      $region44: #{_resize_combined_pallas.1} parent=5 // pred_fallthru
        _
    $region6: #{_resize_combined_pallas.1} parent=1 // loop_footer
      %s19 = sadd.s32 1, %s15
    $region7: #{_resize_combined_pallas.1} parent=1 // loop_footer_branch
      %14 = sbr.rel target = $region3
    $region8: #{_resize_combined_pallas.1} parent=1 // loop_exit
      _
    %1127 = vsyncpa [#allocation3], 1
    %s1128 = scalar_lea.sflag [#allocation3], 1
    %1129 = vsyncpa %s1128, 1
    %1130 = vsyncpa [#allocation6], 1
    %s1131 = scalar_lea.sflag [#allocation6], 1
    %1132 = vsyncpa %s1131, 1
    %1133 = vsyncpa [#allocation4], 1
    %s1134 = scalar_lea.sflag [#allocation4], 1
    %1135 = vsyncpa %s1134, 1

</llo_original>
